<compile_context>
chip_gen: v6e
topology: v6e:2x2x1
jax: 0.10.0
libtpu: 0.0.40
codegen_flags: <defaults>
</compile_context>

<pallas_src>
import jax
import jax.numpy as jnp
from jax import lax
from jax.experimental import pallas as pl
from jax.experimental.pallas import tpu as pltpu


def _vspec(shape):
    nd = len(shape)
    return pl.BlockSpec(shape, lambda i, _nd=nd: (0,) * _nd)


# --------------------------------------------------------------------------
# Fused kernel: biGRU recurrence + output projection + log-softmax +
# label-smoothed masked loss + argmax predictions + masked correct count.
# --------------------------------------------------------------------------
def _make_fused_kernel(T, Bp, Hd, K, eps=0.1):
    G = 2 * Hd  # per-gate width in the [fwd | bwd] interleaved layout

    def kernel(gi_ref,        # (T*Bp, 6*Hd) f32: pre-projected input gates;
                              #   row block t = [r_f(t)|r_b(T-1-t)|z_f(t)|
                              #                  z_b(T-1-t)|n_f(t)|n_b(T-1-t)]
               whh_ref,       # (2*Hd, 6*Hd) f32 block-diag hidden weights
               bhh_ref,       # (1, 6*Hd)    f32
               wof_ref,       # (Hd, K)      f32  = W_out[:, :Hd].T
               wob_ref,       # (Hd, K)      f32  = W_out[:, Hd:].T
               bo_ref,        # (1, K)       f32
               label_ref,     # (T*Bp, 1)    i32  (time-major, padded rows = 0)
               pred_ref,      # (T*Bp, 1)    i32  out
               loss_ref,      # (1, 1)       f32  out
               correct_ref,   # (1, 1)       f32  out
               hf_ref,        # (T*Bp, Hd)   f32  scratch: forward hidden states
               hb_ref):       # (T*Bp, Hd)   f32  scratch: backward hidden states
        whh = whh_ref[...]
        bhh = bhh_ref[...]

        # ---- serial biGRU recurrence: both directions advance per step with
        #      a single hidden-state matmul on the MXU. ----------------------
        def step(t, h_cat):                      # h_cat: (Bp, 2*Hd) = [h_f|h_b]
            row_f = pl.multiple_of(t * Bp, Bp)             # fwd: time t
            row_b = pl.multiple_of((T - 1 - t) * Bp, Bp)   # bwd: time T-1-t
            gi_t = gi_ref[pl.ds(row_f, Bp), :]             # (Bp, 6*Hd)
            gh = jnp.dot(h_cat, whh, preferred_element_type=jnp.float32) + bhh
            r = jax.nn.sigmoid(gi_t[:, 0:G] + gh[:, 0:G])
            z = jax.nn.sigmoid(gi_t[:, G:2 * G] + gh[:, G:2 * G])
            n = jnp.tanh(gi_t[:, 2 * G:3 * G] + r * gh[:, 2 * G:3 * G])
            h_new = (1.0 - z) * n + z * h_cat              # (Bp, 2*Hd)
            hf_ref[pl.ds(row_f, Bp), :] = h_new[:, 0:Hd]
            hb_ref[pl.ds(row_b, Bp), :] = h_new[:, Hd:G]
            return h_new

        lax.fori_loop(0, T, step, jnp.zeros((Bp, G), jnp.float32), unroll=True)

        # ---- output projection over ALL timesteps at once, then log-softmax,
        #      label-smoothed masked NLL, argmax and correct count. ----------
        logits = (jnp.dot(hf_ref[...], wof_ref[...],
                          preferred_element_type=jnp.float32)
                  + jnp.dot(hb_ref[...], wob_ref[...],
                            preferred_element_type=jnp.float32)
                  + bo_ref[...])                           # (T*Bp, K)

        mx = jnp.max(logits, axis=-1, keepdims=True)
        sh = logits - mx
        logp = sh - jnp.log(jnp.sum(jnp.exp(sh), axis=-1, keepdims=True))

        labels = label_ref[...]                            # (T*Bp, 1) i32
        iota_k = lax.broadcasted_iota(jnp.int32, (T * Bp, K), 1)
        onehot = (iota_k == labels).astype(jnp.float32)
        mask = (labels > 0).astype(jnp.float32)            # (T*Bp, 1)

        per_pos = -((1.0 - eps) * jnp.sum(onehot * logp, axis=-1, keepdims=True)
                    + (eps / K) * jnp.sum(logp, axis=-1, keepdims=True))
        loss_ref[...] = jnp.sum(mask * per_pos, axis=0, keepdims=True)

        # argmax with first-max tie-breaking (matches torch.argmax behaviour).
        pred = jnp.min(jnp.where(logits >= mx, iota_k, K),
                       axis=-1, keepdims=True)             # (T*Bp, 1) i32
        correct_ref[...] = jnp.sum(mask * (pred == labels).astype(jnp.float32),
                                   axis=0, keepdims=True)
        pred_ref[...] = pred

    return kernel


# --------------------------------------------------------------------------
# Parameter init (deterministic, synthetic) and forward wrapper.
# --------------------------------------------------------------------------
def init_params(key, vocab, hidden, tagset):
    Hd = hidden // 2
    ks = jax.random.split(key, 11)
    s = 0.1
    n = lambda k, shape: s * jax.random.normal(k, shape, jnp.float32)
    return {
        "emb": n(ks[0], (vocab, hidden)),
        # PyTorch nn.GRU parameter shapes (gate order r, z, n)
        "w_ih_f": n(ks[1], (3 * Hd, hidden)),
        "w_hh_f": n(ks[2], (3 * Hd, Hd)),
        "b_ih_f": n(ks[3], (3 * Hd,)),
        "b_hh_f": n(ks[4], (3 * Hd,)),
        "w_ih_b": n(ks[5], (3 * Hd, hidden)),
        "w_hh_b": n(ks[6], (3 * Hd, Hd)),
        "b_ih_b": n(ks[7], (3 * Hd,)),
        "b_hh_b": n(ks[8], (3 * Hd,)),
        # nn.Linear(hidden, tagset)
        "w_out": n(ks[9], (tagset, hidden)),
        "b_out": n(ks[10], (tagset,)),
    }


def only_gru_forward(params, src, label):
    B, T = src.shape
    H = params["emb"].shape[1]
    Hd = H // 2
    K = params["w_out"].shape[0]
    Bp = ((B + 7) // 8) * 8                 # pad batch to a sublane multiple

    # ---- embedding lookup (glue).  TODO(synk): WordEmbedding internals
    # (position embedding / LayerNorm / dropout) unspecified; plain lookup.
    emb = jnp.take(params["emb"], src, axis=0)                    # (B, T, H)
    x = jnp.transpose(emb, (1, 0, 2)).astype(jnp.float32)         # (T, B, H)
    x = jnp.pad(x, ((0, 0), (0, Bp - B), (0, 0)))                 # (T, Bp, H)

    # ---- hoisted GRU input projection (both directions, all timesteps) as
    # one big matmul, bf16 MXU inputs / f32 accumulate, fused with the
    # embedding by XLA.  Columns interleaved per gate [r_f|r_b|z_f|z_b|n_f|n_b]
    # and the backward half pre-reversed in time so the kernel reads a single
    # contiguous row block per recurrence step.
    xb = x.astype(jnp.bfloat16)
    gi_f = jnp.einsum("tbh,hg->tbg", xb,
                      params["w_ih_f"].T.astype(jnp.bfloat16),
                      preferred_element_type=jnp.float32) + params["b_ih_f"]
    gi_b = jnp.einsum("tbh,hg->tbg", xb,
                      params["w_ih_b"].T.astype(jnp.bfloat16),
                      preferred_element_type=jnp.float32) + params["b_ih_b"]
    gi_b = gi_b[::-1]                                             # time-reverse
    gi = jnp.concatenate(
        [gi_f[..., 0:Hd],       gi_b[..., 0:Hd],
         gi_f[..., Hd:2 * Hd],  gi_b[..., Hd:2 * Hd],
         gi_f[..., 2 * Hd:],    gi_b[..., 2 * Hd:]], axis=-1)     # (T, Bp, 6Hd)
    gi2 = gi.reshape(T * Bp, 6 * Hd)

    # ---- block-diagonal hidden-state weights (both directions, gate order
    # matching gi2's column layout).
    def _hh(w):                    # (3Hd, Hd) -> per-gate (Hd, Hd), transposed
        return w[0:Hd].T, w[Hd:2 * Hd].T, w[2 * Hd:].T
    rf, zf, nf = _hh(params["w_hh_f"])
    rb, zb, nb = _hh(params["w_hh_b"])
    Z = jnp.zeros((Hd, Hd), jnp.float32)
    whh = jnp.concatenate(
        [jnp.concatenate([rf, Z, zf, Z, nf, Z], axis=1),
         jnp.concatenate([Z, rb, Z, zb, Z, nb], axis=1)], axis=0)  # (2Hd, 6Hd)
    bf, bb = params["b_hh_f"], params["b_hh_b"]
    bhh = jnp.concatenate([bf[0:Hd], bb[0:Hd], bf[Hd:2 * Hd], bb[Hd:2 * Hd],
                           bf[2 * Hd:], bb[2 * Hd:]])[None, :]     # (1, 6Hd)

    # ---- output projection weights split by direction.
    wof = params["w_out"][:, 0:Hd].T                               # (Hd, K)
    wob = params["w_out"][:, Hd:].T                                # (Hd, K)
    bo = params["b_out"][None, :]                                  # (1, K)

    # ---- labels, time-major and batch-padded (padded rows -> label 0 -> mask 0)
    label_tp = jnp.pad(jnp.transpose(label, (1, 0)).astype(jnp.int32),
                       ((0, 0), (0, Bp - B)))                      # (T, Bp)
    labels2 = label_tp.reshape(T * Bp, 1)

    kernel = _make_fused_kernel(T, Bp, Hd, K)
    pred_p, loss, correct = pl.pallas_call(
        kernel,
        out_shape=(jax.ShapeDtypeStruct((T * Bp, 1), jnp.int32),
                   jax.ShapeDtypeStruct((1, 1), jnp.float32),
                   jax.ShapeDtypeStruct((1, 1), jnp.float32)),
        grid=(1,),
        in_specs=[_vspec((T * Bp, 6 * Hd)), _vspec((2 * Hd, 6 * Hd)),
                  _vspec((1, 6 * Hd)), _vspec((Hd, K)), _vspec((Hd, K)),
                  _vspec((1, K)), _vspec((T * Bp, 1))],
        out_specs=[_vspec((T * Bp, 1)), _vspec((1, 1)), _vspec((1, 1))],
        scratch_shapes=[pltpu.VMEM((T * Bp, Hd), jnp.float32),
                        pltpu.VMEM((T * Bp, Hd), jnp.float32)],
        compiler_params=pltpu.CompilerParams(
            dimension_semantics=("arbitrary",),
            vmem_limit_bytes=32 * 1024 * 1024),
    )(gi2, whh, bhh, wof, wob, bo, labels2)

    # ---- back to PyTorch's batch-major flat ordering (glue).
    predict = pred_p.reshape(T, Bp)[:, :B].T.reshape(-1)           # (B*T,) i32
    label_flat = label.reshape(-1).astype(jnp.int32)
    return loss[0, 0], correct[0, 0], predict, label_flat


# --------------------------------------------------------------------------
# Pure-JAX f32 reference of the PyTorch forward (for a tolerance check).
# --------------------------------------------------------------------------
def reference_forward(params, src, label):
    B, T = src.shape
    H = params["emb"].shape[1]
    Hd = H // 2
    K = params["w_out"].shape[0]
    emb = jnp.take(params["emb"], src, axis=0)
    x = jnp.transpose(emb, (1, 0, 2)).astype(jnp.float32)          # (T, B, H)

    def run_dir(x_seq, w_ih, w_hh, b_ih, b_hh):
        def step(h, x_t):
            gi = x_t @ w_ih.T + b_ih
            gh = h @ w_hh.T + b_hh
            r = jax.nn.sigmoid(gi[:, 0:Hd] + gh[:, 0:Hd])
            z = jax.nn.sigmoid(gi[:, Hd:2 * Hd] + gh[:, Hd:2 * Hd])
            n = jnp.tanh(gi[:, 2 * Hd:] + r * gh[:, 2 * Hd:])
            h_new = (1.0 - z) * n + z * h
            return h_new, h_new
        _, hs = lax.scan(step, jnp.zeros((B, Hd), jnp.float32), x_seq)
        return hs

    hf = run_dir(x, params["w_ih_f"], params["w_hh_f"],
                 params["b_ih_f"], params["b_hh_f"])
    hb = run_dir(x[::-1], params["w_ih_b"], params["w_hh_b"],
                 params["b_ih_b"], params["b_hh_b"])[::-1]
    out = jnp.concatenate([hf, hb], axis=-1)                       # (T, B, H)
    logits = (jnp.transpose(out, (1, 0, 2)) @ params["w_out"].T
              + params["b_out"])                                   # (B, T, K)
    logp = jax.nn.log_softmax(logits, axis=-1).reshape(-1, K)
    lab = label.reshape(-1)
    mask = (lab > 0).astype(jnp.float32)
    onehot = jax.nn.one_hot(lab, K, dtype=jnp.float32)
    eps = 0.1
    smooth = (1.0 - eps) * onehot + eps / K
    per = -jnp.sum(logp * smooth, axis=1)
    loss = jnp.sum(mask * per)
    pred = jnp.argmax(logp, axis=-1)
    correct = jnp.sum(mask * (pred == lab).astype(jnp.float32))
    return loss, correct, pred.astype(jnp.int32), lab.astype(jnp.int32)


if __name__ == "__main__":
    VOCAB, B, T, H, K = 100, 2, 8, 32, 7

    key = jax.random.PRNGKey(0)
    k_param, k_src, k_lbl = jax.random.split(key, 3)
    params = init_params(k_param, VOCAB, H, K)
    src = jax.random.randint(k_src, (B, T), 0, VOCAB, dtype=jnp.int32)
    label = jax.random.randint(k_lbl, (B, T), 0, K, dtype=jnp.int32)

    fwd = jax.jit(only_gru_forward)
    loss, correct, predict, label_out = fwd(params, src, label)
    jax.block_until_ready((loss, correct, predict, label_out))

    assert loss.shape == () and bool(jnp.isfinite(loss))
    assert predict.shape == (B * T,) and label_out.shape == (B * T,)
    assert 0.0 <= float(correct) <= B * T

    # cross-check against a pure-JAX f32 reference (kernel path uses a bf16
    # input projection, so allow a loose tolerance).
    ref_loss, _, _, ref_label = reference_forward(params, src, label)
    assert jnp.allclose(loss, ref_loss, rtol=2e-2, atol=2e-2), (loss, ref_loss)
    assert bool(jnp.all(label_out == ref_label))

    print("KERNEL_OK")
</pallas_src>

<mosaic_0001>
module attributes {stable_mosaic.version = 11 : i64} {
  func.func @kernel(%arg0: i32, %arg1: memref<64x96xf32, #tpu.memory_space<vmem>>, %arg2: memref<32x96xf32, #tpu.memory_space<vmem>>, %arg3: memref<1x96xf32, #tpu.memory_space<vmem>>, %arg4: memref<16x7xf32, #tpu.memory_space<vmem>>, %arg5: memref<16x7xf32, #tpu.memory_space<vmem>>, %arg6: memref<1x7xf32, #tpu.memory_space<vmem>>, %arg7: memref<64x1xi32, #tpu.memory_space<vmem>>, %arg8: memref<64x1xi32, #tpu.memory_space<vmem>>, %arg9: memref<1x1xf32, #tpu.memory_space<vmem>>, %arg10: memref<1x1xf32, #tpu.memory_space<vmem>>, %arg11: memref<64x16xf32, #tpu.memory_space<vmem>>, %arg12: memref<64x16xf32, #tpu.memory_space<vmem>>) attributes {dimension_semantics = [#tpu.dimension_semantics<arbitrary>], iteration_bounds = array<i64: 1>, scalar_prefetch = 0 : i64, scratch_operands = 2 : i64, tpu.core_type = #tpu.core_type<tc>, window_params = [{pipeline_mode = #tpu.pipeline_mode<synchronous>, transform_indices = @transform_0, window_bounds = array<i64: 64, 96>}, {pipeline_mode = #tpu.pipeline_mode<synchronous>, transform_indices = @transform_1, window_bounds = array<i64: 32, 96>}, {pipeline_mode = #tpu.pipeline_mode<synchronous>, transform_indices = @transform_2, window_bounds = array<i64: 1, 96>}, {pipeline_mode = #tpu.pipeline_mode<synchronous>, transform_indices = @transform_3, window_bounds = array<i64: 16, 7>}, {pipeline_mode = #tpu.pipeline_mode<synchronous>, transform_indices = @transform_4, window_bounds = array<i64: 16, 7>}, {pipeline_mode = #tpu.pipeline_mode<synchronous>, transform_indices = @transform_5, window_bounds = array<i64: 1, 7>}, {pipeline_mode = #tpu.pipeline_mode<synchronous>, transform_indices = @transform_6, window_bounds = array<i64: 64, 1>}, {pipeline_mode = #tpu.pipeline_mode<synchronous>, transform_indices = @transform_7, window_bounds = array<i64: 64, 1>}, {pipeline_mode = #tpu.pipeline_mode<synchronous>, transform_indices = @transform_8, window_bounds = array<i64: 1, 1>}, {pipeline_mode = #tpu.pipeline_mode<synchronous>, transform_indices = @transform_9, window_bounds = array<i64: 1, 1>}]} {
    %c0 = arith.constant 0 : index
    %c0_0 = arith.constant 0 : index
    %0 = vector.load %arg2[%c0, %c0_0] : memref<32x96xf32, #tpu.memory_space<vmem>>, vector<32x96xf32>
    %c0_1 = arith.constant 0 : index
    %c0_2 = arith.constant 0 : index
    %1 = vector.load %arg3[%c0_1, %c0_2] : memref<1x96xf32, #tpu.memory_space<vmem>>, vector<1x96xf32>
    %cst = arith.constant 0.000000e+00 : f32
    %2 = vector.broadcast %cst : f32 to vector<8x32xf32>
    %c0_i32 = arith.constant 0 : i32
    %c8_i32 = arith.constant 8 : i32
    %3 = arith.muli %c0_i32, %c8_i32 : i32
    %4 = tpu.assume_multiple %3, 8 : i32
    %c7_i32 = arith.constant 7 : i32
    %5 = arith.subi %c7_i32, %c0_i32 : i32
    %c8_i32_3 = arith.constant 8 : i32
    %6 = arith.muli %5, %c8_i32_3 : i32
    %7 = tpu.assume_multiple %6, 8 : i32
    %8 = arith.index_cast %4 : i32 to index
    %c0_4 = arith.constant 0 : index
    %9 = vector.load %arg1[%8, %c0_4] : memref<64x96xf32, #tpu.memory_space<vmem>>, vector<8x96xf32>
    %cst_5 = arith.constant dense<0.000000e+00> : vector<8x96xf32>
    %10 = tpu.matmul %2, %0, %cst_5 {dimension_numbers = #tpu.dot_dimension_numbers<[1], [0], [0], [1], [0, 0, 1, 1], [], []>} : vector<8x32xf32>, vector<32x96xf32>, vector<8x96xf32> -> vector<8x96xf32>
    %11 = vector.broadcast %1 : vector<1x96xf32> to vector<8x96xf32>
    %12 = arith.addf %10, %11 : vector<8x96xf32>
    %13 = vector.extract_strided_slice %9 {offsets = [0, 0], sizes = [8, 32], strides = [1, 1]} : vector<8x96xf32> to vector<8x32xf32>
    %14 = vector.extract_strided_slice %12 {offsets = [0, 0], sizes = [8, 32], strides = [1, 1]} : vector<8x96xf32> to vector<8x32xf32>
    %15 = arith.addf %13, %14 : vector<8x32xf32>
    %16 = arith.negf %15 : vector<8x32xf32>
    %17 = math.exp %16 : vector<8x32xf32>
    %cst_6 = arith.constant 1.000000e+00 : f32
    %18 = vector.broadcast %cst_6 : f32 to vector<8x32xf32>
    %19 = arith.addf %18, %17 : vector<8x32xf32>
    %20 = arith.divf %18, %19 : vector<8x32xf32>
    %21 = vector.extract_strided_slice %9 {offsets = [0, 32], sizes = [8, 32], strides = [1, 1]} : vector<8x96xf32> to vector<8x32xf32>
    %22 = vector.extract_strided_slice %12 {offsets = [0, 32], sizes = [8, 32], strides = [1, 1]} : vector<8x96xf32> to vector<8x32xf32>
    %23 = arith.addf %21, %22 : vector<8x32xf32>
    %24 = arith.negf %23 : vector<8x32xf32>
    %25 = math.exp %24 : vector<8x32xf32>
    %cst_7 = arith.constant 1.000000e+00 : f32
    %26 = vector.broadcast %cst_7 : f32 to vector<8x32xf32>
    %27 = arith.addf %26, %25 : vector<8x32xf32>
    %28 = arith.divf %26, %27 : vector<8x32xf32>
    %29 = vector.extract_strided_slice %9 {offsets = [0, 64], sizes = [8, 32], strides = [1, 1]} : vector<8x96xf32> to vector<8x32xf32>
    %30 = vector.extract_strided_slice %12 {offsets = [0, 64], sizes = [8, 32], strides = [1, 1]} : vector<8x96xf32> to vector<8x32xf32>
    %31 = arith.mulf %20, %30 : vector<8x32xf32>
    %32 = arith.addf %29, %31 : vector<8x32xf32>
    %33 = math.tanh %32 : vector<8x32xf32>
    %cst_8 = arith.constant 1.000000e+00 : f32
    %34 = vector.broadcast %cst_8 : f32 to vector<8x32xf32>
    %35 = arith.subf %34, %28 : vector<8x32xf32>
    %36 = arith.mulf %35, %33 : vector<8x32xf32>
    %37 = arith.mulf %28, %2 : vector<8x32xf32>
    %38 = arith.addf %36, %37 : vector<8x32xf32>
    %39 = vector.extract_strided_slice %38 {offsets = [0, 0], sizes = [8, 16], strides = [1, 1]} : vector<8x32xf32> to vector<8x16xf32>
    %40 = arith.index_cast %4 : i32 to index
    %c0_9 = arith.constant 0 : index
    %41 = vector.load %arg11[%40, %c0_9] : memref<64x16xf32, #tpu.memory_space<vmem>>, vector<8x16xf32>
    tpu.vector_store %arg11[%40, %c0_9], %39 {strides = array<i32>} : memref<64x16xf32, #tpu.memory_space<vmem>>, vector<8x16xf32>,
    %42 = vector.extract_strided_slice %38 {offsets = [0, 16], sizes = [8, 16], strides = [1, 1]} : vector<8x32xf32> to vector<8x16xf32>
    %43 = arith.index_cast %7 : i32 to index
    %c0_10 = arith.constant 0 : index
    %44 = vector.load %arg12[%43, %c0_10] : memref<64x16xf32, #tpu.memory_space<vmem>>, vector<8x16xf32>
    tpu.vector_store %arg12[%43, %c0_10], %42 {strides = array<i32>} : memref<64x16xf32, #tpu.memory_space<vmem>>, vector<8x16xf32>,
    %c1_i32 = arith.constant 1 : i32
    %c8_i32_11 = arith.constant 8 : i32
    %45 = arith.muli %c1_i32, %c8_i32_11 : i32
    %46 = tpu.assume_multiple %45, 8 : i32
    %c7_i32_12 = arith.constant 7 : i32
    %47 = arith.subi %c7_i32_12, %c1_i32 : i32
    %c8_i32_13 = arith.constant 8 : i32
    %48 = arith.muli %47, %c8_i32_13 : i32
    %49 = tpu.assume_multiple %48, 8 : i32
    %50 = arith.index_cast %46 : i32 to index
    %c0_14 = arith.constant 0 : index
    %51 = vector.load %arg1[%50, %c0_14] : memref<64x96xf32, #tpu.memory_space<vmem>>, vector<8x96xf32>
    %cst_15 = arith.constant dense<0.000000e+00> : vector<8x96xf32>
    %52 = tpu.matmul %38, %0, %cst_15 {dimension_numbers = #tpu.dot_dimension_numbers<[1], [0], [0], [1], [0, 0, 1, 1], [], []>} : vector<8x32xf32>, vector<32x96xf32>, vector<8x96xf32> -> vector<8x96xf32>
    %53 = vector.broadcast %1 : vector<1x96xf32> to vector<8x96xf32>
    %54 = arith.addf %52, %53 : vector<8x96xf32>
    %55 = vector.extract_strided_slice %51 {offsets = [0, 0], sizes = [8, 32], strides = [1, 1]} : vector<8x96xf32> to vector<8x32xf32>
    %56 = vector.extract_strided_slice %54 {offsets = [0, 0], sizes = [8, 32], strides = [1, 1]} : vector<8x96xf32> to vector<8x32xf32>
    %57 = arith.addf %55, %56 : vector<8x32xf32>
    %58 = arith.negf %57 : vector<8x32xf32>
    %59 = math.exp %58 : vector<8x32xf32>
    %cst_16 = arith.constant 1.000000e+00 : f32
    %60 = vector.broadcast %cst_16 : f32 to vector<8x32xf32>
    %61 = arith.addf %60, %59 : vector<8x32xf32>
    %62 = arith.divf %60, %61 : vector<8x32xf32>
    %63 = vector.extract_strided_slice %51 {offsets = [0, 32], sizes = [8, 32], strides = [1, 1]} : vector<8x96xf32> to vector<8x32xf32>
    %64 = vector.extract_strided_slice %54 {offsets = [0, 32], sizes = [8, 32], strides = [1, 1]} : vector<8x96xf32> to vector<8x32xf32>
    %65 = arith.addf %63, %64 : vector<8x32xf32>
    %66 = arith.negf %65 : vector<8x32xf32>
    %67 = math.exp %66 : vector<8x32xf32>
    %cst_17 = arith.constant 1.000000e+00 : f32
    %68 = vector.broadcast %cst_17 : f32 to vector<8x32xf32>
    %69 = arith.addf %68, %67 : vector<8x32xf32>
    %70 = arith.divf %68, %69 : vector<8x32xf32>
    %71 = vector.extract_strided_slice %51 {offsets = [0, 64], sizes = [8, 32], strides = [1, 1]} : vector<8x96xf32> to vector<8x32xf32>
    %72 = vector.extract_strided_slice %54 {offsets = [0, 64], sizes = [8, 32], strides = [1, 1]} : vector<8x96xf32> to vector<8x32xf32>
    %73 = arith.mulf %62, %72 : vector<8x32xf32>
    %74 = arith.addf %71, %73 : vector<8x32xf32>
    %75 = math.tanh %74 : vector<8x32xf32>
    %cst_18 = arith.constant 1.000000e+00 : f32
    %76 = vector.broadcast %cst_18 : f32 to vector<8x32xf32>
    %77 = arith.subf %76, %70 : vector<8x32xf32>
    %78 = arith.mulf %77, %75 : vector<8x32xf32>
    %79 = arith.mulf %70, %38 : vector<8x32xf32>
    %80 = arith.addf %78, %79 : vector<8x32xf32>
    %81 = vector.extract_strided_slice %80 {offsets = [0, 0], sizes = [8, 16], strides = [1, 1]} : vector<8x32xf32> to vector<8x16xf32>
    %82 = arith.index_cast %46 : i32 to index
    %c0_19 = arith.constant 0 : index
    %83 = vector.load %arg11[%82, %c0_19] : memref<64x16xf32, #tpu.memory_space<vmem>>, vector<8x16xf32>
    tpu.vector_store %arg11[%82, %c0_19], %81 {strides = array<i32>} : memref<64x16xf32, #tpu.memory_space<vmem>>, vector<8x16xf32>,
    %84 = vector.extract_strided_slice %80 {offsets = [0, 16], sizes = [8, 16], strides = [1, 1]} : vector<8x32xf32> to vector<8x16xf32>
    %85 = arith.index_cast %49 : i32 to index
    %c0_20 = arith.constant 0 : index
    %86 = vector.load %arg12[%85, %c0_20] : memref<64x16xf32, #tpu.memory_space<vmem>>, vector<8x16xf32>
    tpu.vector_store %arg12[%85, %c0_20], %84 {strides = array<i32>} : memref<64x16xf32, #tpu.memory_space<vmem>>, vector<8x16xf32>,
    %c2_i32 = arith.constant 2 : i32
    %c8_i32_21 = arith.constant 8 : i32
    %87 = arith.muli %c2_i32, %c8_i32_21 : i32
    %88 = tpu.assume_multiple %87, 8 : i32
    %c7_i32_22 = arith.constant 7 : i32
    %89 = arith.subi %c7_i32_22, %c2_i32 : i32
    %c8_i32_23 = arith.constant 8 : i32
    %90 = arith.muli %89, %c8_i32_23 : i32
    %91 = tpu.assume_multiple %90, 8 : i32
    %92 = arith.index_cast %88 : i32 to index
    %c0_24 = arith.constant 0 : index
    %93 = vector.load %arg1[%92, %c0_24] : memref<64x96xf32, #tpu.memory_space<vmem>>, vector<8x96xf32>
    %cst_25 = arith.constant dense<0.000000e+00> : vector<8x96xf32>
    %94 = tpu.matmul %80, %0, %cst_25 {dimension_numbers = #tpu.dot_dimension_numbers<[1], [0], [0], [1], [0, 0, 1, 1], [], []>} : vector<8x32xf32>, vector<32x96xf32>, vector<8x96xf32> -> vector<8x96xf32>
    %95 = vector.broadcast %1 : vector<1x96xf32> to vector<8x96xf32>
    %96 = arith.addf %94, %95 : vector<8x96xf32>
    %97 = vector.extract_strided_slice %93 {offsets = [0, 0], sizes = [8, 32], strides = [1, 1]} : vector<8x96xf32> to vector<8x32xf32>
    %98 = vector.extract_strided_slice %96 {offsets = [0, 0], sizes = [8, 32], strides = [1, 1]} : vector<8x96xf32> to vector<8x32xf32>
    %99 = arith.addf %97, %98 : vector<8x32xf32>
    %100 = arith.negf %99 : vector<8x32xf32>
    %101 = math.exp %100 : vector<8x32xf32>
    %cst_26 = arith.constant 1.000000e+00 : f32
    %102 = vector.broadcast %cst_26 : f32 to vector<8x32xf32>
    %103 = arith.addf %102, %101 : vector<8x32xf32>
    %104 = arith.divf %102, %103 : vector<8x32xf32>
    %105 = vector.extract_strided_slice %93 {offsets = [0, 32], sizes = [8, 32], strides = [1, 1]} : vector<8x96xf32> to vector<8x32xf32>
    %106 = vector.extract_strided_slice %96 {offsets = [0, 32], sizes = [8, 32], strides = [1, 1]} : vector<8x96xf32> to vector<8x32xf32>
    %107 = arith.addf %105, %106 : vector<8x32xf32>
    %108 = arith.negf %107 : vector<8x32xf32>
    %109 = math.exp %108 : vector<8x32xf32>
    %cst_27 = arith.constant 1.000000e+00 : f32
    %110 = vector.broadcast %cst_27 : f32 to vector<8x32xf32>
    %111 = arith.addf %110, %109 : vector<8x32xf32>
    %112 = arith.divf %110, %111 : vector<8x32xf32>
    %113 = vector.extract_strided_slice %93 {offsets = [0, 64], sizes = [8, 32], strides = [1, 1]} : vector<8x96xf32> to vector<8x32xf32>
    %114 = vector.extract_strided_slice %96 {offsets = [0, 64], sizes = [8, 32], strides = [1, 1]} : vector<8x96xf32> to vector<8x32xf32>
    %115 = arith.mulf %104, %114 : vector<8x32xf32>
    %116 = arith.addf %113, %115 : vector<8x32xf32>
    %117 = math.tanh %116 : vector<8x32xf32>
    %cst_28 = arith.constant 1.000000e+00 : f32
    %118 = vector.broadcast %cst_28 : f32 to vector<8x32xf32>
    %119 = arith.subf %118, %112 : vector<8x32xf32>
    %120 = arith.mulf %119, %117 : vector<8x32xf32>
    %121 = arith.mulf %112, %80 : vector<8x32xf32>
    %122 = arith.addf %120, %121 : vector<8x32xf32>
    %123 = vector.extract_strided_slice %122 {offsets = [0, 0], sizes = [8, 16], strides = [1, 1]} : vector<8x32xf32> to vector<8x16xf32>
    %124 = arith.index_cast %88 : i32 to index
    %c0_29 = arith.constant 0 : index
    %125 = vector.load %arg11[%124, %c0_29] : memref<64x16xf32, #tpu.memory_space<vmem>>, vector<8x16xf32>
    tpu.vector_store %arg11[%124, %c0_29], %123 {strides = array<i32>} : memref<64x16xf32, #tpu.memory_space<vmem>>, vector<8x16xf32>,
    %126 = vector.extract_strided_slice %122 {offsets = [0, 16], sizes = [8, 16], strides = [1, 1]} : vector<8x32xf32> to vector<8x16xf32>
    %127 = arith.index_cast %91 : i32 to index
    %c0_30 = arith.constant 0 : index
    %128 = vector.load %arg12[%127, %c0_30] : memref<64x16xf32, #tpu.memory_space<vmem>>, vector<8x16xf32>
    tpu.vector_store %arg12[%127, %c0_30], %126 {strides = array<i32>} : memref<64x16xf32, #tpu.memory_space<vmem>>, vector<8x16xf32>,
    %c3_i32 = arith.constant 3 : i32
    %c8_i32_31 = arith.constant 8 : i32
    %129 = arith.muli %c3_i32, %c8_i32_31 : i32
    %130 = tpu.assume_multiple %129, 8 : i32
    %c7_i32_32 = arith.constant 7 : i32
    %131 = arith.subi %c7_i32_32, %c3_i32 : i32
    %c8_i32_33 = arith.constant 8 : i32
    %132 = arith.muli %131, %c8_i32_33 : i32
    %133 = tpu.assume_multiple %132, 8 : i32
    %134 = arith.index_cast %130 : i32 to index
    %c0_34 = arith.constant 0 : index
    %135 = vector.load %arg1[%134, %c0_34] : memref<64x96xf32, #tpu.memory_space<vmem>>, vector<8x96xf32>
    %cst_35 = arith.constant dense<0.000000e+00> : vector<8x96xf32>
    %136 = tpu.matmul %122, %0, %cst_35 {dimension_numbers = #tpu.dot_dimension_numbers<[1], [0], [0], [1], [0, 0, 1, 1], [], []>} : vector<8x32xf32>, vector<32x96xf32>, vector<8x96xf32> -> vector<8x96xf32>
    %137 = vector.broadcast %1 : vector<1x96xf32> to vector<8x96xf32>
    %138 = arith.addf %136, %137 : vector<8x96xf32>
    %139 = vector.extract_strided_slice %135 {offsets = [0, 0], sizes = [8, 32], strides = [1, 1]} : vector<8x96xf32> to vector<8x32xf32>
    %140 = vector.extract_strided_slice %138 {offsets = [0, 0], sizes = [8, 32], strides = [1, 1]} : vector<8x96xf32> to vector<8x32xf32>
    %141 = arith.addf %139, %140 : vector<8x32xf32>
    %142 = arith.negf %141 : vector<8x32xf32>
    %143 = math.exp %142 : vector<8x32xf32>
    %cst_36 = arith.constant 1.000000e+00 : f32
    %144 = vector.broadcast %cst_36 : f32 to vector<8x32xf32>
    %145 = arith.addf %144, %143 : vector<8x32xf32>
    %146 = arith.divf %144, %145 : vector<8x32xf32>
    %147 = vector.extract_strided_slice %135 {offsets = [0, 32], sizes = [8, 32], strides = [1, 1]} : vector<8x96xf32> to vector<8x32xf32>
    %148 = vector.extract_strided_slice %138 {offsets = [0, 32], sizes = [8, 32], strides = [1, 1]} : vector<8x96xf32> to vector<8x32xf32>
    %149 = arith.addf %147, %148 : vector<8x32xf32>
    %150 = arith.negf %149 : vector<8x32xf32>
    %151 = math.exp %150 : vector<8x32xf32>
    %cst_37 = arith.constant 1.000000e+00 : f32
    %152 = vector.broadcast %cst_37 : f32 to vector<8x32xf32>
    %153 = arith.addf %152, %151 : vector<8x32xf32>
    %154 = arith.divf %152, %153 : vector<8x32xf32>
    %155 = vector.extract_strided_slice %135 {offsets = [0, 64], sizes = [8, 32], strides = [1, 1]} : vector<8x96xf32> to vector<8x32xf32>
    %156 = vector.extract_strided_slice %138 {offsets = [0, 64], sizes = [8, 32], strides = [1, 1]} : vector<8x96xf32> to vector<8x32xf32>
    %157 = arith.mulf %146, %156 : vector<8x32xf32>
    %158 = arith.addf %155, %157 : vector<8x32xf32>
    %159 = math.tanh %158 : vector<8x32xf32>
    %cst_38 = arith.constant 1.000000e+00 : f32
    %160 = vector.broadcast %cst_38 : f32 to vector<8x32xf32>
    %161 = arith.subf %160, %154 : vector<8x32xf32>
    %162 = arith.mulf %161, %159 : vector<8x32xf32>
    %163 = arith.mulf %154, %122 : vector<8x32xf32>
    %164 = arith.addf %162, %163 : vector<8x32xf32>
    %165 = vector.extract_strided_slice %164 {offsets = [0, 0], sizes = [8, 16], strides = [1, 1]} : vector<8x32xf32> to vector<8x16xf32>
    %166 = arith.index_cast %130 : i32 to index
    %c0_39 = arith.constant 0 : index
    %167 = vector.load %arg11[%166, %c0_39] : memref<64x16xf32, #tpu.memory_space<vmem>>, vector<8x16xf32>
    tpu.vector_store %arg11[%166, %c0_39], %165 {strides = array<i32>} : memref<64x16xf32, #tpu.memory_space<vmem>>, vector<8x16xf32>,
    %168 = vector.extract_strided_slice %164 {offsets = [0, 16], sizes = [8, 16], strides = [1, 1]} : vector<8x32xf32> to vector<8x16xf32>
    %169 = arith.index_cast %133 : i32 to index
    %c0_40 = arith.constant 0 : index
    %170 = vector.load %arg12[%169, %c0_40] : memref<64x16xf32, #tpu.memory_space<vmem>>, vector<8x16xf32>
    tpu.vector_store %arg12[%169, %c0_40], %168 {strides = array<i32>} : memref<64x16xf32, #tpu.memory_space<vmem>>, vector<8x16xf32>,
    %c4_i32 = arith.constant 4 : i32
    %c8_i32_41 = arith.constant 8 : i32
    %171 = arith.muli %c4_i32, %c8_i32_41 : i32
    %172 = tpu.assume_multiple %171, 8 : i32
    %c7_i32_42 = arith.constant 7 : i32
    %173 = arith.subi %c7_i32_42, %c4_i32 : i32
    %c8_i32_43 = arith.constant 8 : i32
    %174 = arith.muli %173, %c8_i32_43 : i32
    %175 = tpu.assume_multiple %174, 8 : i32
    %176 = arith.index_cast %172 : i32 to index
    %c0_44 = arith.constant 0 : index
    %177 = vector.load %arg1[%176, %c0_44] : memref<64x96xf32, #tpu.memory_space<vmem>>, vector<8x96xf32>
    %cst_45 = arith.constant dense<0.000000e+00> : vector<8x96xf32>
    %178 = tpu.matmul %164, %0, %cst_45 {dimension_numbers = #tpu.dot_dimension_numbers<[1], [0], [0], [1], [0, 0, 1, 1], [], []>} : vector<8x32xf32>, vector<32x96xf32>, vector<8x96xf32> -> vector<8x96xf32>
    %179 = vector.broadcast %1 : vector<1x96xf32> to vector<8x96xf32>
    %180 = arith.addf %178, %179 : vector<8x96xf32>
    %181 = vector.extract_strided_slice %177 {offsets = [0, 0], sizes = [8, 32], strides = [1, 1]} : vector<8x96xf32> to vector<8x32xf32>
    %182 = vector.extract_strided_slice %180 {offsets = [0, 0], sizes = [8, 32], strides = [1, 1]} : vector<8x96xf32> to vector<8x32xf32>
    %183 = arith.addf %181, %182 : vector<8x32xf32>
    %184 = arith.negf %183 : vector<8x32xf32>
    %185 = math.exp %184 : vector<8x32xf32>
    %cst_46 = arith.constant 1.000000e+00 : f32
    %186 = vector.broadcast %cst_46 : f32 to vector<8x32xf32>
    %187 = arith.addf %186, %185 : vector<8x32xf32>
    %188 = arith.divf %186, %187 : vector<8x32xf32>
    %189 = vector.extract_strided_slice %177 {offsets = [0, 32], sizes = [8, 32], strides = [1, 1]} : vector<8x96xf32> to vector<8x32xf32>
    %190 = vector.extract_strided_slice %180 {offsets = [0, 32], sizes = [8, 32], strides = [1, 1]} : vector<8x96xf32> to vector<8x32xf32>
    %191 = arith.addf %189, %190 : vector<8x32xf32>
    %192 = arith.negf %191 : vector<8x32xf32>
    %193 = math.exp %192 : vector<8x32xf32>
    %cst_47 = arith.constant 1.000000e+00 : f32
    %194 = vector.broadcast %cst_47 : f32 to vector<8x32xf32>
    %195 = arith.addf %194, %193 : vector<8x32xf32>
    %196 = arith.divf %194, %195 : vector<8x32xf32>
    %197 = vector.extract_strided_slice %177 {offsets = [0, 64], sizes = [8, 32], strides = [1, 1]} : vector<8x96xf32> to vector<8x32xf32>
    %198 = vector.extract_strided_slice %180 {offsets = [0, 64], sizes = [8, 32], strides = [1, 1]} : vector<8x96xf32> to vector<8x32xf32>
    %199 = arith.mulf %188, %198 : vector<8x32xf32>
    %200 = arith.addf %197, %199 : vector<8x32xf32>
    %201 = math.tanh %200 : vector<8x32xf32>
    %cst_48 = arith.constant 1.000000e+00 : f32
    %202 = vector.broadcast %cst_48 : f32 to vector<8x32xf32>
    %203 = arith.subf %202, %196 : vector<8x32xf32>
    %204 = arith.mulf %203, %201 : vector<8x32xf32>
    %205 = arith.mulf %196, %164 : vector<8x32xf32>
    %206 = arith.addf %204, %205 : vector<8x32xf32>
    %207 = vector.extract_strided_slice %206 {offsets = [0, 0], sizes = [8, 16], strides = [1, 1]} : vector<8x32xf32> to vector<8x16xf32>
    %208 = arith.index_cast %172 : i32 to index
    %c0_49 = arith.constant 0 : index
    %209 = vector.load %arg11[%208, %c0_49] : memref<64x16xf32, #tpu.memory_space<vmem>>, vector<8x16xf32>
    tpu.vector_store %arg11[%208, %c0_49], %207 {strides = array<i32>} : memref<64x16xf32, #tpu.memory_space<vmem>>, vector<8x16xf32>,
    %210 = vector.extract_strided_slice %206 {offsets = [0, 16], sizes = [8, 16], strides = [1, 1]} : vector<8x32xf32> to vector<8x16xf32>
    %211 = arith.index_cast %175 : i32 to index
    %c0_50 = arith.constant 0 : index
    %212 = vector.load %arg12[%211, %c0_50] : memref<64x16xf32, #tpu.memory_space<vmem>>, vector<8x16xf32>
    tpu.vector_store %arg12[%211, %c0_50], %210 {strides = array<i32>} : memref<64x16xf32, #tpu.memory_space<vmem>>, vector<8x16xf32>,
    %c5_i32 = arith.constant 5 : i32
    %c8_i32_51 = arith.constant 8 : i32
    %213 = arith.muli %c5_i32, %c8_i32_51 : i32
    %214 = tpu.assume_multiple %213, 8 : i32
    %c7_i32_52 = arith.constant 7 : i32
    %215 = arith.subi %c7_i32_52, %c5_i32 : i32
    %c8_i32_53 = arith.constant 8 : i32
    %216 = arith.muli %215, %c8_i32_53 : i32
    %217 = tpu.assume_multiple %216, 8 : i32
    %218 = arith.index_cast %214 : i32 to index
    %c0_54 = arith.constant 0 : index
    %219 = vector.load %arg1[%218, %c0_54] : memref<64x96xf32, #tpu.memory_space<vmem>>, vector<8x96xf32>
    %cst_55 = arith.constant dense<0.000000e+00> : vector<8x96xf32>
    %220 = tpu.matmul %206, %0, %cst_55 {dimension_numbers = #tpu.dot_dimension_numbers<[1], [0], [0], [1], [0, 0, 1, 1], [], []>} : vector<8x32xf32>, vector<32x96xf32>, vector<8x96xf32> -> vector<8x96xf32>
    %221 = vector.broadcast %1 : vector<1x96xf32> to vector<8x96xf32>
    %222 = arith.addf %220, %221 : vector<8x96xf32>
    %223 = vector.extract_strided_slice %219 {offsets = [0, 0], sizes = [8, 32], strides = [1, 1]} : vector<8x96xf32> to vector<8x32xf32>
    %224 = vector.extract_strided_slice %222 {offsets = [0, 0], sizes = [8, 32], strides = [1, 1]} : vector<8x96xf32> to vector<8x32xf32>
    %225 = arith.addf %223, %224 : vector<8x32xf32>
    %226 = arith.negf %225 : vector<8x32xf32>
    %227 = math.exp %226 : vector<8x32xf32>
    %cst_56 = arith.constant 1.000000e+00 : f32
    %228 = vector.broadcast %cst_56 : f32 to vector<8x32xf32>
    %229 = arith.addf %228, %227 : vector<8x32xf32>
    %230 = arith.divf %228, %229 : vector<8x32xf32>
    %231 = vector.extract_strided_slice %219 {offsets = [0, 32], sizes = [8, 32], strides = [1, 1]} : vector<8x96xf32> to vector<8x32xf32>
    %232 = vector.extract_strided_slice %222 {offsets = [0, 32], sizes = [8, 32], strides = [1, 1]} : vector<8x96xf32> to vector<8x32xf32>
    %233 = arith.addf %231, %232 : vector<8x32xf32>
    %234 = arith.negf %233 : vector<8x32xf32>
    %235 = math.exp %234 : vector<8x32xf32>
    %cst_57 = arith.constant 1.000000e+00 : f32
    %236 = vector.broadcast %cst_57 : f32 to vector<8x32xf32>
    %237 = arith.addf %236, %235 : vector<8x32xf32>
    %238 = arith.divf %236, %237 : vector<8x32xf32>
    %239 = vector.extract_strided_slice %219 {offsets = [0, 64], sizes = [8, 32], strides = [1, 1]} : vector<8x96xf32> to vector<8x32xf32>
    %240 = vector.extract_strided_slice %222 {offsets = [0, 64], sizes = [8, 32], strides = [1, 1]} : vector<8x96xf32> to vector<8x32xf32>
    %241 = arith.mulf %230, %240 : vector<8x32xf32>
    %242 = arith.addf %239, %241 : vector<8x32xf32>
    %243 = math.tanh %242 : vector<8x32xf32>
    %cst_58 = arith.constant 1.000000e+00 : f32
    %244 = vector.broadcast %cst_58 : f32 to vector<8x32xf32>
    %245 = arith.subf %244, %238 : vector<8x32xf32>
    %246 = arith.mulf %245, %243 : vector<8x32xf32>
    %247 = arith.mulf %238, %206 : vector<8x32xf32>
    %248 = arith.addf %246, %247 : vector<8x32xf32>
    %249 = vector.extract_strided_slice %248 {offsets = [0, 0], sizes = [8, 16], strides = [1, 1]} : vector<8x32xf32> to vector<8x16xf32>
    %250 = arith.index_cast %214 : i32 to index
    %c0_59 = arith.constant 0 : index
    %251 = vector.load %arg11[%250, %c0_59] : memref<64x16xf32, #tpu.memory_space<vmem>>, vector<8x16xf32>
    tpu.vector_store %arg11[%250, %c0_59], %249 {strides = array<i32>} : memref<64x16xf32, #tpu.memory_space<vmem>>, vector<8x16xf32>,
    %252 = vector.extract_strided_slice %248 {offsets = [0, 16], sizes = [8, 16], strides = [1, 1]} : vector<8x32xf32> to vector<8x16xf32>
    %253 = arith.index_cast %217 : i32 to index
    %c0_60 = arith.constant 0 : index
    %254 = vector.load %arg12[%253, %c0_60] : memref<64x16xf32, #tpu.memory_space<vmem>>, vector<8x16xf32>
    tpu.vector_store %arg12[%253, %c0_60], %252 {strides = array<i32>} : memref<64x16xf32, #tpu.memory_space<vmem>>, vector<8x16xf32>,
    %c6_i32 = arith.constant 6 : i32
    %c8_i32_61 = arith.constant 8 : i32
    %255 = arith.muli %c6_i32, %c8_i32_61 : i32
    %256 = tpu.assume_multiple %255, 8 : i32
    %c7_i32_62 = arith.constant 7 : i32
    %257 = arith.subi %c7_i32_62, %c6_i32 : i32
    %c8_i32_63 = arith.constant 8 : i32
    %258 = arith.muli %257, %c8_i32_63 : i32
    %259 = tpu.assume_multiple %258, 8 : i32
    %260 = arith.index_cast %256 : i32 to index
    %c0_64 = arith.constant 0 : index
    %261 = vector.load %arg1[%260, %c0_64] : memref<64x96xf32, #tpu.memory_space<vmem>>, vector<8x96xf32>
    %cst_65 = arith.constant dense<0.000000e+00> : vector<8x96xf32>
    %262 = tpu.matmul %248, %0, %cst_65 {dimension_numbers = #tpu.dot_dimension_numbers<[1], [0], [0], [1], [0, 0, 1, 1], [], []>} : vector<8x32xf32>, vector<32x96xf32>, vector<8x96xf32> -> vector<8x96xf32>
    %263 = vector.broadcast %1 : vector<1x96xf32> to vector<8x96xf32>
    %264 = arith.addf %262, %263 : vector<8x96xf32>
    %265 = vector.extract_strided_slice %261 {offsets = [0, 0], sizes = [8, 32], strides = [1, 1]} : vector<8x96xf32> to vector<8x32xf32>
    %266 = vector.extract_strided_slice %264 {offsets = [0, 0], sizes = [8, 32], strides = [1, 1]} : vector<8x96xf32> to vector<8x32xf32>
    %267 = arith.addf %265, %266 : vector<8x32xf32>
    %268 = arith.negf %267 : vector<8x32xf32>
    %269 = math.exp %268 : vector<8x32xf32>
    %cst_66 = arith.constant 1.000000e+00 : f32
    %270 = vector.broadcast %cst_66 : f32 to vector<8x32xf32>
    %271 = arith.addf %270, %269 : vector<8x32xf32>
    %272 = arith.divf %270, %271 : vector<8x32xf32>
    %273 = vector.extract_strided_slice %261 {offsets = [0, 32], sizes = [8, 32], strides = [1, 1]} : vector<8x96xf32> to vector<8x32xf32>
    %274 = vector.extract_strided_slice %264 {offsets = [0, 32], sizes = [8, 32], strides = [1, 1]} : vector<8x96xf32> to vector<8x32xf32>
    %275 = arith.addf %273, %274 : vector<8x32xf32>
    %276 = arith.negf %275 : vector<8x32xf32>
    %277 = math.exp %276 : vector<8x32xf32>
    %cst_67 = arith.constant 1.000000e+00 : f32
    %278 = vector.broadcast %cst_67 : f32 to vector<8x32xf32>
    %279 = arith.addf %278, %277 : vector<8x32xf32>
    %280 = arith.divf %278, %279 : vector<8x32xf32>
    %281 = vector.extract_strided_slice %261 {offsets = [0, 64], sizes = [8, 32], strides = [1, 1]} : vector<8x96xf32> to vector<8x32xf32>
    %282 = vector.extract_strided_slice %264 {offsets = [0, 64], sizes = [8, 32], strides = [1, 1]} : vector<8x96xf32> to vector<8x32xf32>
    %283 = arith.mulf %272, %282 : vector<8x32xf32>
    %284 = arith.addf %281, %283 : vector<8x32xf32>
    %285 = math.tanh %284 : vector<8x32xf32>
    %cst_68 = arith.constant 1.000000e+00 : f32
    %286 = vector.broadcast %cst_68 : f32 to vector<8x32xf32>
    %287 = arith.subf %286, %280 : vector<8x32xf32>
    %288 = arith.mulf %287, %285 : vector<8x32xf32>
    %289 = arith.mulf %280, %248 : vector<8x32xf32>
    %290 = arith.addf %288, %289 : vector<8x32xf32>
    %291 = vector.extract_strided_slice %290 {offsets = [0, 0], sizes = [8, 16], strides = [1, 1]} : vector<8x32xf32> to vector<8x16xf32>
    %292 = arith.index_cast %256 : i32 to index
    %c0_69 = arith.constant 0 : index
    %293 = vector.load %arg11[%292, %c0_69] : memref<64x16xf32, #tpu.memory_space<vmem>>, vector<8x16xf32>
    tpu.vector_store %arg11[%292, %c0_69], %291 {strides = array<i32>} : memref<64x16xf32, #tpu.memory_space<vmem>>, vector<8x16xf32>,
    %294 = vector.extract_strided_slice %290 {offsets = [0, 16], sizes = [8, 16], strides = [1, 1]} : vector<8x32xf32> to vector<8x16xf32>
    %295 = arith.index_cast %259 : i32 to index
    %c0_70 = arith.constant 0 : index
    %296 = vector.load %arg12[%295, %c0_70] : memref<64x16xf32, #tpu.memory_space<vmem>>, vector<8x16xf32>
    tpu.vector_store %arg12[%295, %c0_70], %294 {strides = array<i32>} : memref<64x16xf32, #tpu.memory_space<vmem>>, vector<8x16xf32>,
    %c7_i32_71 = arith.constant 7 : i32
    %c8_i32_72 = arith.constant 8 : i32
    %297 = arith.muli %c7_i32_71, %c8_i32_72 : i32
    %298 = tpu.assume_multiple %297, 8 : i32
    %c7_i32_73 = arith.constant 7 : i32
    %299 = arith.subi %c7_i32_73, %c7_i32_71 : i32
    %c8_i32_74 = arith.constant 8 : i32
    %300 = arith.muli %299, %c8_i32_74 : i32
    %301 = tpu.assume_multiple %300, 8 : i32
    %302 = arith.index_cast %298 : i32 to index
    %c0_75 = arith.constant 0 : index
    %303 = vector.load %arg1[%302, %c0_75] : memref<64x96xf32, #tpu.memory_space<vmem>>, vector<8x96xf32>
    %cst_76 = arith.constant dense<0.000000e+00> : vector<8x96xf32>
    %304 = tpu.matmul %290, %0, %cst_76 {dimension_numbers = #tpu.dot_dimension_numbers<[1], [0], [0], [1], [0, 0, 1, 1], [], []>} : vector<8x32xf32>, vector<32x96xf32>, vector<8x96xf32> -> vector<8x96xf32>
    %305 = vector.broadcast %1 : vector<1x96xf32> to vector<8x96xf32>
    %306 = arith.addf %304, %305 : vector<8x96xf32>
    %307 = vector.extract_strided_slice %303 {offsets = [0, 0], sizes = [8, 32], strides = [1, 1]} : vector<8x96xf32> to vector<8x32xf32>
    %308 = vector.extract_strided_slice %306 {offsets = [0, 0], sizes = [8, 32], strides = [1, 1]} : vector<8x96xf32> to vector<8x32xf32>
    %309 = arith.addf %307, %308 : vector<8x32xf32>
    %310 = arith.negf %309 : vector<8x32xf32>
    %311 = math.exp %310 : vector<8x32xf32>
    %cst_77 = arith.constant 1.000000e+00 : f32
    %312 = vector.broadcast %cst_77 : f32 to vector<8x32xf32>
    %313 = arith.addf %312, %311 : vector<8x32xf32>
    %314 = arith.divf %312, %313 : vector<8x32xf32>
    %315 = vector.extract_strided_slice %303 {offsets = [0, 32], sizes = [8, 32], strides = [1, 1]} : vector<8x96xf32> to vector<8x32xf32>
    %316 = vector.extract_strided_slice %306 {offsets = [0, 32], sizes = [8, 32], strides = [1, 1]} : vector<8x96xf32> to vector<8x32xf32>
    %317 = arith.addf %315, %316 : vector<8x32xf32>
    %318 = arith.negf %317 : vector<8x32xf32>
    %319 = math.exp %318 : vector<8x32xf32>
    %cst_78 = arith.constant 1.000000e+00 : f32
    %320 = vector.broadcast %cst_78 : f32 to vector<8x32xf32>
    %321 = arith.addf %320, %319 : vector<8x32xf32>
    %322 = arith.divf %320, %321 : vector<8x32xf32>
    %323 = vector.extract_strided_slice %303 {offsets = [0, 64], sizes = [8, 32], strides = [1, 1]} : vector<8x96xf32> to vector<8x32xf32>
    %324 = vector.extract_strided_slice %306 {offsets = [0, 64], sizes = [8, 32], strides = [1, 1]} : vector<8x96xf32> to vector<8x32xf32>
    %325 = arith.mulf %314, %324 : vector<8x32xf32>
    %326 = arith.addf %323, %325 : vector<8x32xf32>
    %327 = math.tanh %326 : vector<8x32xf32>
    %cst_79 = arith.constant 1.000000e+00 : f32
    %328 = vector.broadcast %cst_79 : f32 to vector<8x32xf32>
    %329 = arith.subf %328, %322 : vector<8x32xf32>
    %330 = arith.mulf %329, %327 : vector<8x32xf32>
    %331 = arith.mulf %322, %290 : vector<8x32xf32>
    %332 = arith.addf %330, %331 : vector<8x32xf32>
    %333 = vector.extract_strided_slice %332 {offsets = [0, 0], sizes = [8, 16], strides = [1, 1]} : vector<8x32xf32> to vector<8x16xf32>
    %334 = arith.index_cast %298 : i32 to index
    %c0_80 = arith.constant 0 : index
    %335 = vector.load %arg11[%334, %c0_80] : memref<64x16xf32, #tpu.memory_space<vmem>>, vector<8x16xf32>
    tpu.vector_store %arg11[%334, %c0_80], %333 {strides = array<i32>} : memref<64x16xf32, #tpu.memory_space<vmem>>, vector<8x16xf32>,
    %336 = vector.extract_strided_slice %332 {offsets = [0, 16], sizes = [8, 16], strides = [1, 1]} : vector<8x32xf32> to vector<8x16xf32>
    %337 = arith.index_cast %301 : i32 to index
    %c0_81 = arith.constant 0 : index
    %338 = vector.load %arg12[%337, %c0_81] : memref<64x16xf32, #tpu.memory_space<vmem>>, vector<8x16xf32>
    tpu.vector_store %arg12[%337, %c0_81], %336 {strides = array<i32>} : memref<64x16xf32, #tpu.memory_space<vmem>>, vector<8x16xf32>,
    %c8_i32_82 = arith.constant 8 : i32
    %c0_83 = arith.constant 0 : index
    %c0_84 = arith.constant 0 : index
    %339 = vector.load %arg11[%c0_83, %c0_84] : memref<64x16xf32, #tpu.memory_space<vmem>>, vector<64x16xf32>
    %c0_85 = arith.constant 0 : index
    %c0_86 = arith.constant 0 : index
    %340 = vector.load %arg4[%c0_85, %c0_86] : memref<16x7xf32, #tpu.memory_space<vmem>>, vector<16x7xf32>
    %cst_87 = arith.constant dense<0.000000e+00> : vector<64x7xf32>
    %341 = tpu.matmul %339, %340, %cst_87 {dimension_numbers = #tpu.dot_dimension_numbers<[1], [0], [0], [1], [0, 0, 1, 1], [], []>} : vector<64x16xf32>, vector<16x7xf32>, vector<64x7xf32> -> vector<64x7xf32>
    %c0_88 = arith.constant 0 : index
    %c0_89 = arith.constant 0 : index
    %342 = vector.load %arg12[%c0_88, %c0_89] : memref<64x16xf32, #tpu.memory_space<vmem>>, vector<64x16xf32>
    %c0_90 = arith.constant 0 : index
    %c0_91 = arith.constant 0 : index
    %343 = vector.load %arg5[%c0_90, %c0_91] : memref<16x7xf32, #tpu.memory_space<vmem>>, vector<16x7xf32>
    %cst_92 = arith.constant dense<0.000000e+00> : vector<64x7xf32>
    %344 = tpu.matmul %342, %343, %cst_92 {dimension_numbers = #tpu.dot_dimension_numbers<[1], [0], [0], [1], [0, 0, 1, 1], [], []>} : vector<64x16xf32>, vector<16x7xf32>, vector<64x7xf32> -> vector<64x7xf32>
    %345 = arith.addf %341, %344 : vector<64x7xf32>
    %c0_93 = arith.constant 0 : index
    %c0_94 = arith.constant 0 : index
    %346 = vector.load %arg6[%c0_93, %c0_94] : memref<1x7xf32, #tpu.memory_space<vmem>>, vector<1x7xf32>
    %347 = vector.broadcast %346 : vector<1x7xf32> to vector<64x7xf32>
    %348 = arith.addf %345, %347 : vector<64x7xf32>
    %cst_95 = arith.constant dense<0xFF800000> : vector<64xf32>
    %349 = vector.multi_reduction <maximumf>, %348, %cst_95 [1] : vector<64x7xf32> to vector<64xf32>
    %350 = vector.shape_cast %349 : vector<64xf32> to vector<64x1xf32>
    %351 = vector.broadcast %350 : vector<64x1xf32> to vector<64x7xf32>
    %352 = arith.subf %348, %351 : vector<64x7xf32>
    %353 = math.exp %352 : vector<64x7xf32>
    %cst_96 = arith.constant dense<0.000000e+00> : vector<64xf32>
    %354 = vector.multi_reduction <add>, %353, %cst_96 [1] : vector<64x7xf32> to vector<64xf32>
    %355 = vector.shape_cast %354 : vector<64xf32> to vector<64x1xf32>
    %356 = math.log %355 : vector<64x1xf32>
    %357 = vector.broadcast %356 : vector<64x1xf32> to vector<64x7xf32>
    %358 = arith.subf %352, %357 : vector<64x7xf32>
    %c0_97 = arith.constant 0 : index
    %c0_98 = arith.constant 0 : index
    %359 = vector.load %arg7[%c0_97, %c0_98] : memref<64x1xi32, #tpu.memory_space<vmem>>, vector<64x1xi32>
    %360 = tpu.iota {dimensions = array<i32: 1>} : vector<64x7xi32>
    %361 = vector.broadcast %359 : vector<64x1xi32> to vector<64x7xi32>
    %362 = arith.cmpi eq, %360, %361 : vector<64x7xi32>
    %363 = arith.extui %362 : vector<64x7xi1> to vector<64x7xi32>
    %364 = arith.sitofp %363 : vector<64x7xi32> to vector<64x7xf32>
    %c0_i32_99 = arith.constant 0 : i32
    %365 = vector.broadcast %c0_i32_99 : i32 to vector<64x1xi32>
    %366 = arith.cmpi sgt, %359, %365 : vector<64x1xi32>
    %367 = arith.extui %366 : vector<64x1xi1> to vector<64x1xi32>
    %368 = arith.sitofp %367 : vector<64x1xi32> to vector<64x1xf32>
    %369 = arith.mulf %364, %358 : vector<64x7xf32>
    %cst_100 = arith.constant dense<0.000000e+00> : vector<64xf32>
    %370 = vector.multi_reduction <add>, %369, %cst_100 [1] : vector<64x7xf32> to vector<64xf32>
    %371 = vector.shape_cast %370 : vector<64xf32> to vector<64x1xf32>
    %cst_101 = arith.constant 0.899999976 : f32
    %372 = vector.broadcast %cst_101 : f32 to vector<64x1xf32>
    %373 = arith.mulf %372, %371 : vector<64x1xf32>
    %cst_102 = arith.constant dense<0.000000e+00> : vector<64xf32>
    %374 = vector.multi_reduction <add>, %358, %cst_102 [1] : vector<64x7xf32> to vector<64xf32>
    %375 = vector.shape_cast %374 : vector<64xf32> to vector<64x1xf32>
    %cst_103 = arith.constant 0.0142857144 : f32
    %376 = vector.broadcast %cst_103 : f32 to vector<64x1xf32>
    %377 = arith.mulf %376, %375 : vector<64x1xf32>
    %378 = arith.addf %373, %377 : vector<64x1xf32>
    %cst_104 = arith.constant 0.000000e+00 : f32
    %379 = vector.broadcast %cst_104 : f32 to vector<64x1xf32>
    %380 = arith.subf %379, %378 : vector<64x1xf32>
    %381 = arith.mulf %368, %380 : vector<64x1xf32>
    %cst_105 = arith.constant dense<0.000000e+00> : vector<1xf32>
    %382 = vector.multi_reduction <add>, %381, %cst_105 [0] : vector<64x1xf32> to vector<1xf32>
    %383 = vector.shape_cast %382 : vector<1xf32> to vector<1x1xf32>
    %c0_106 = arith.constant 0 : index
    %c0_107 = arith.constant 0 : index
    %384 = vector.load %arg9[%c0_106, %c0_107] : memref<1x1xf32, #tpu.memory_space<vmem>>, vector<1x1xf32>
    tpu.vector_store %arg9[%c0_106, %c0_107], %383 {strides = array<i32>} : memref<1x1xf32, #tpu.memory_space<vmem>>, vector<1x1xf32>,
    %385 = vector.broadcast %350 : vector<64x1xf32> to vector<64x7xf32>
    %386 = arith.cmpf oge, %348, %385 : vector<64x7xf32>
    %c7_i32_108 = arith.constant 7 : i32
    %387 = vector.broadcast %c7_i32_108 : i32 to vector<64x7xi32>
    %388 = arith.select %386, %360, %387 : vector<64x7xi1>, vector<64x7xi32>
    %cst_109 = arith.constant dense<2147483647> : vector<64xi32>
    %389 = vector.multi_reduction <minsi>, %388, %cst_109 [1] : vector<64x7xi32> to vector<64xi32>
    %390 = vector.shape_cast %389 : vector<64xi32> to vector<64x1xi32>
    %391 = arith.cmpi eq, %390, %359 : vector<64x1xi32>
    %392 = arith.extui %391 : vector<64x1xi1> to vector<64x1xi32>
    %393 = arith.sitofp %392 : vector<64x1xi32> to vector<64x1xf32>
    %394 = arith.mulf %368, %393 : vector<64x1xf32>
    %cst_110 = arith.constant dense<0.000000e+00> : vector<1xf32>
    %395 = vector.multi_reduction <add>, %394, %cst_110 [0] : vector<64x1xf32> to vector<1xf32>
    %396 = vector.shape_cast %395 : vector<1xf32> to vector<1x1xf32>
    %c0_111 = arith.constant 0 : index
    %c0_112 = arith.constant 0 : index
    %397 = vector.load %arg10[%c0_111, %c0_112] : memref<1x1xf32, #tpu.memory_space<vmem>>, vector<1x1xf32>
    tpu.vector_store %arg10[%c0_111, %c0_112], %396 {strides = array<i32>} : memref<1x1xf32, #tpu.memory_space<vmem>>, vector<1x1xf32>,
    %c0_113 = arith.constant 0 : index
    %c0_114 = arith.constant 0 : index
    %398 = vector.load %arg8[%c0_113, %c0_114] : memref<64x1xi32, #tpu.memory_space<vmem>>, vector<64x1xi32>
    tpu.vector_store %arg8[%c0_113, %c0_114], %390 {strides = array<i32>} : memref<64x1xi32, #tpu.memory_space<vmem>>, vector<64x1xi32>,
    return
  }
  func.func @transform_0(%arg0: i32) -> (i32, i32) {
    %c0_i32 = arith.constant 0 : i32
    %c0_i32_0 = arith.constant 0 : i32
    %c0_i32_1 = arith.constant 0 : i32
    return %c0_i32, %c0_i32_0 : i32, i32
  }
  func.func @transform_1(%arg0: i32) -> (i32, i32) {
    %c0_i32 = arith.constant 0 : i32
    %c0_i32_0 = arith.constant 0 : i32
    %c0_i32_1 = arith.constant 0 : i32
    return %c0_i32, %c0_i32_0 : i32, i32
  }
  func.func @transform_2(%arg0: i32) -> (i32, i32) {
    %c0_i32 = arith.constant 0 : i32
    %c0_i32_0 = arith.constant 0 : i32
    %c0_i32_1 = arith.constant 0 : i32
    return %c0_i32, %c0_i32_0 : i32, i32
  }
  func.func @transform_3(%arg0: i32) -> (i32, i32) {
    %c0_i32 = arith.constant 0 : i32
    %c0_i32_0 = arith.constant 0 : i32
    %c0_i32_1 = arith.constant 0 : i32
    return %c0_i32, %c0_i32_0 : i32, i32
  }
  func.func @transform_4(%arg0: i32) -> (i32, i32) {
    %c0_i32 = arith.constant 0 : i32
    %c0_i32_0 = arith.constant 0 : i32
    %c0_i32_1 = arith.constant 0 : i32
    return %c0_i32, %c0_i32_0 : i32, i32
  }
  func.func @transform_5(%arg0: i32) -> (i32, i32) {
    %c0_i32 = arith.constant 0 : i32
    %c0_i32_0 = arith.constant 0 : i32
    %c0_i32_1 = arith.constant 0 : i32
    return %c0_i32, %c0_i32_0 : i32, i32
  }
  func.func @transform_6(%arg0: i32) -> (i32, i32) {
    %c0_i32 = arith.constant 0 : i32
    %c0_i32_0 = arith.constant 0 : i32
    %c0_i32_1 = arith.constant 0 : i32
    return %c0_i32, %c0_i32_0 : i32, i32
  }
  func.func @transform_7(%arg0: i32) -> (i32, i32) {
    %c0_i32 = arith.constant 0 : i32
    %c0_i32_0 = arith.constant 0 : i32
    %c0_i32_1 = arith.constant 0 : i32
    return %c0_i32, %c0_i32_0 : i32, i32
  }
  func.func @transform_8(%arg0: i32) -> (i32, i32) {
    %c0_i32 = arith.constant 0 : i32
    %c0_i32_0 = arith.constant 0 : i32
    %c0_i32_1 = arith.constant 0 : i32
    return %c0_i32, %c0_i32_0 : i32, i32
  }
  func.func @transform_9(%arg0: i32) -> (i32, i32) {
    %c0_i32 = arith.constant 0 : i32
    %c0_i32_0 = arith.constant 0 : i32
    %c0_i32_1 = arith.constant 0 : i32
    return %c0_i32, %c0_i32_0 : i32, i32
  }
}

</mosaic_0001>

<llo_original>
// kernel: reverse
$region0: #{reverse}
  #allocation0 [shape = 's32[1]{0}', space=sflag, size = 0x4, scoped, tag = 'scoped memory for reverse']
  %s0 = inlined_call_operand.vmem [shape: f32[8,8,16], index: 0, kind: input, shape index: {}]
  %s1 = inlined_call_operand.vmem [shape: f32[8,8,16], index: 1, kind: output, shape index: {}]
  %s2 = scalar_lea.vmem %s0, 56
  %v3 = vld [vmem:[%s2] sm:$0xff]
  %4 = vst [vmem:[%s1] sm:$0xff] %v3
  %s5 = scalar_lea.vmem %s0, 48
  %v6 = vld [vmem:[%s5] sm:$0xff]
  %s7 = scalar_lea.vmem %s1, 8
  %8 = vst [vmem:[%s7] sm:$0xff] %v6
  %s9 = scalar_lea.vmem %s0, 40
  %v10 = vld [vmem:[%s9] sm:$0xff]
  %s11 = scalar_lea.vmem %s1, 16
  %12 = vst [vmem:[%s11] sm:$0xff] %v10
  %s13 = scalar_lea.vmem %s0, 32
  %v14 = vld [vmem:[%s13] sm:$0xff]
  %s15 = scalar_lea.vmem %s1, 24
  %16 = vst [vmem:[%s15] sm:$0xff] %v14
  %s17 = scalar_lea.vmem %s0, 24
  %v18 = vld [vmem:[%s17] sm:$0xff]
  %s19 = scalar_lea.vmem %s1, 32
  %20 = vst [vmem:[%s19] sm:$0xff] %v18
  %s21 = scalar_lea.vmem %s0, 16
  %v22 = vld [vmem:[%s21] sm:$0xff]
  %s23 = scalar_lea.vmem %s1, 40
  %24 = vst [vmem:[%s23] sm:$0xff] %v22
  %s25 = scalar_lea.vmem %s0, 8
  %v26 = vld [vmem:[%s25] sm:$0xff]
  %s27 = scalar_lea.vmem %s1, 48
  %28 = vst [vmem:[%s27] sm:$0xff] %v26
  %v29 = vld [vmem:[%s0] sm:$0xff]
  %s30 = scalar_lea.vmem %s1, 56
  %31 = vst [vmem:[%s30] sm:$0xff] %v29

// kernel: only_gru_forward.1
$region0: #{only_gru_forward.1}
  #allocation0 [shape = 'u32[]', space=smem, size = 0x4, offset = 0x4, fixed_abs, tag = 'smem constant byte address 0x4 - core index']
  #allocation1 [shape = 'u32[144,128]{1,0:T(1,128)}', space=vmem, size = 0x12000, scoped, tag = 'internal scratch']
  #allocation2 [shape = 'f32[64,16]{1,0:T(8,128)}', space=vmem, size = 0x8000, scoped, tag = 'scratch operand']
  #allocation3 [shape = 'f32[64,16]{1,0:T(8,128)}', space=vmem, size = 0x8000, scoped, tag = 'scratch operand']
  %s0 = inlined_call_operand.vmem [shape: f32[64,96], index: 0, kind: input, shape index: {}]
  %s1 = inlined_call_operand.vmem [shape: f32[32,96], index: 1, kind: input, shape index: {}]
  %s2 = inlined_call_operand.vmem [shape: f32[1,96], index: 2, kind: input, shape index: {}]
  %s3 = inlined_call_operand.vmem [shape: f32[16,7], index: 3, kind: input, shape index: {}]
  %s4 = inlined_call_operand.vmem [shape: f32[16,7], index: 4, kind: input, shape index: {}]
  %s5 = inlined_call_operand.vmem [shape: f32[1,7], index: 5, kind: input, shape index: {}]
  %s6 = inlined_call_operand.vmem [shape: s32[64,1], index: 6, kind: input, shape index: {}]
  %s7 = inlined_call_operand.vmem [shape: s32[64,1], index: 7, kind: output, shape index: {0}]
  %s8 = inlined_call_operand.hbm [shape: f32[1,1], index: 8, kind: output, shape index: {1}]
  %s9 = inlined_call_operand.hbm [shape: f32[1,1], index: 9, kind: output, shape index: {2}]
  %10 = xla_tuple %s7, %s8, %s9
  %s11 = sld [smem:[#allocation0]]
  $region54: #{only_gru_forward.1} parent=0
    _
  %s13 = ssub.s32 1, %s11
  %s14 = scalar_select 0, %s13, %s11
  $region1: #{only_gru_forward.1} parent=0
    #allocation4 [shape = 'u8[512]{0}', space=vmem, size = 0x400, scoped, tag = 'output window, operand 1, single buffered']
    #allocation5 [shape = 's32[1]{0}', space=sflag, size = 0x4, scoped, tag = 'scoped memory for only_gru_forward.1']
    #allocation6 [shape = 'u8[512]{0}', space=vmem, size = 0x400, scoped, tag = 'output window, operand 2, single buffered']
    #allocation7 [shape = 's32[1]{0}', space=sflag, size = 0x4, scoped, tag = 'scoped memory for only_gru_forward.1']
    %15 = vsyncpa [#allocation5], 0
    %16 = vsyncpa [#allocation7], 0
    // Predicated region
    $region2: #{only_gru_forward.1} parent=1 // pred_check
      _
    $region3: #{only_gru_forward.1} parent=1 // pred_check_branch
      %18 = sbr.rel (0) target = $region5
    $region4: #{only_gru_forward.1} parent=1 // pred_region
      _
    $region5: #{only_gru_forward.1} parent=1 // pred_fallthru
      _
    // Predicated region
    $region6: #{only_gru_forward.1} parent=1 // pred_check
      _
    $region7: #{only_gru_forward.1} parent=1 // pred_check_branch
      %20 = sbr.rel (0) target = $region9
    $region8: #{only_gru_forward.1} parent=1 // pred_region
      _
    $region9: #{only_gru_forward.1} parent=1 // pred_fallthru
      _
    // Predicated region
    $region10: #{only_gru_forward.1} parent=1 // pred_check
      _
    $region11: #{only_gru_forward.1} parent=1 // pred_check_branch
      %22 = sbr.rel (0) target = $region13
    $region12: #{only_gru_forward.1} parent=1 // pred_region
      _
    $region13: #{only_gru_forward.1} parent=1 // pred_fallthru
      _
    // Predicated region
    $region14: #{only_gru_forward.1} parent=1 // pred_check
      _
    $region15: #{only_gru_forward.1} parent=1 // pred_check_branch
      %24 = sbr.rel (0) target = $region17
    $region16: #{only_gru_forward.1} parent=1 // pred_region
      _
    $region17: #{only_gru_forward.1} parent=1 // pred_fallthru
      _
    // Predicated region
    $region18: #{only_gru_forward.1} parent=1 // pred_check
      _
    $region19: #{only_gru_forward.1} parent=1 // pred_check_branch
      %26 = sbr.rel (0) target = $region21
    $region20: #{only_gru_forward.1} parent=1 // pred_region
      _
    $region21: #{only_gru_forward.1} parent=1 // pred_fallthru
      _
    // Predicated region
    $region22: #{only_gru_forward.1} parent=1 // pred_check
      _
    $region23: #{only_gru_forward.1} parent=1 // pred_check_branch
      %28 = sbr.rel (0) target = $region25
    $region24: #{only_gru_forward.1} parent=1 // pred_region
      _
    $region25: #{only_gru_forward.1} parent=1 // pred_fallthru
      _
    // Predicated region
    $region26: #{only_gru_forward.1} parent=1 // pred_check
      _
    $region27: #{only_gru_forward.1} parent=1 // pred_check_branch
      %30 = sbr.rel (0) target = $region29
    $region28: #{only_gru_forward.1} parent=1 // pred_region
      _
    $region29: #{only_gru_forward.1} parent=1 // pred_fallthru
      _
    %v31 = vld [vmem:[%s1] sm:$0xff]
    %v32 = vld [vmem:[%s1 + $0x8] sm:$0xff]
    %v33 = vld [vmem:[%s1 + $0x10] sm:$0xff]
    %v34 = vld [vmem:[%s1 + $0x18] sm:$0xff]
    %v35 = vld [vmem:[%s2] sm:$0x1]
    %v36 = vld [vmem:[%s0] sm:$0xff]
    %v38 = vlaneseq
    %v39 = vshrl.u32 %v38, 7
    %v40 = vsub.s32 0, %v39
    %v41 = vrot.slane %v35, %v40
    %vm43 = vcmask 261120
    %v45 = vsel %vm43, 0.0, 0
    %47 = vmatprep.subr.mxu0 0.0
    %48 = vmatpush1.msra.mxu0 0.0
    %49 = vmatprep.subr.mxu0 0.0
    %50 = vmatpush1.msra.mxu0 0.0
    %51 = vmatprep.subr.mxu0 0.0
    %52 = vmatpush1.msra.mxu0 0.0
    %53 = vmatprep.subr.mxu0 0.0
    %54 = vmatpush1.msra.mxu0 0.0
    %55 = vmatprep.subr.mxu0 0.0
    %56 = vmatpush1.msra.mxu0 0.0
    %57 = vmatprep.subr.mxu0 0.0
    %58 = vmatpush1.msra.mxu0 0.0
    %59 = vmatprep.subr.mxu0 0.0
    %60 = vmatpush1.msra.mxu0 0.0
    %61 = vmatprep.subr.mxu0 0.0
    %62 = vmatpush1.msra.mxu0 0.0
    %63 = vmatprep.subr.mxu0 0.0
    %64 = vmatpush1.msra.mxu0 0.0
    %65 = vmatprep.subr.mxu0 0.0
    %66 = vmatpush1.msra.mxu0 0.0
    %67 = vmatprep.subr.mxu0 0.0
    %68 = vmatpush1.msra.mxu0 0.0
    %69 = vmatprep.subr.mxu0 0.0
    %70 = vmatpush1.msra.mxu0 0.0
    %71 = vmatprep.subr.mxu0 0.0
    %72 = vmatpush1.msra.mxu0 %v34
    %73 = vmatprep.subr.mxu0 0.0
    %74 = vmatpush1.msra.mxu0 %v33
    %75 = vmatprep.subr.mxu0 0.0
    %76 = vmatpush1.msra.mxu0 %v32
    %77 = vmatprep.subr.mxu0 0.0
    %78 = vmatpush1.msra.mxu0 %v31
    %79 = vmatprep.subr.mxu0 0.0
    %80 = vmatpush2.msra.mxu0 0.0
    %81 = vmatprep.subr.mxu0 0.0
    %82 = vmatpush2.msra.mxu0 0.0
    %83 = vmatprep.subr.mxu0 0.0
    %84 = vmatpush2.msra.mxu0 0.0
    %85 = vmatprep.subr.mxu0 0.0
    %86 = vmatpush2.msra.mxu0 0.0
    %87 = vmatprep.subr.mxu0 0.0
    %88 = vmatpush2.msra.mxu0 0.0
    %89 = vmatprep.subr.mxu0 0.0
    %90 = vmatpush2.msra.mxu0 0.0
    %91 = vmatprep.subr.mxu0 0.0
    %92 = vmatpush2.msra.mxu0 0.0
    %93 = vmatprep.subr.mxu0 0.0
    %94 = vmatpush2.msra.mxu0 0.0
    %95 = vmatprep.subr.mxu0 0.0
    %96 = vmatpush2.msra.mxu0 0.0
    %97 = vmatprep.subr.mxu0 0.0
    %98 = vmatpush2.msra.mxu0 0.0
    %99 = vmatprep.subr.mxu0 0.0
    %100 = vmatpush2.msra.mxu0 0.0
    %101 = vmatprep.subr.mxu0 0.0
    %102 = vmatpush2.msra.mxu0 0.0
    %103 = vmatprep.subr.mxu0 0.0
    %104 = vmatpush2.msra.mxu0 0.0
    %105 = vmatprep.subr.mxu0 0.0
    %106 = vmatpush2.msra.mxu0 0.0
    %107 = vmatprep.subr.mxu0 0.0
    %108 = vmatpush2.msra.mxu0 0.0
    %109 = vmatprep.subr.mxu0 0.0
    %110 = vmatpush2.msra.mxu0 0.0
    %111 = vmatprep.mubr.f32.mxu0 0.0
    %112 = vmatmul.mubr.f32.gmra.mxu0 %v45
    %v113 = vpop.f32.mrf.mxu0
    %v114 = vadd.f32 %v41, %v113
    %v115 = vpop.f32.mrf.mxu0
    %116 = vdwg.mxu0
    %v117 = vadd.f32 %v36, %v114
    %v118 = vxor.u32 %v117, 2147483648
    %v119 = vmul.f32 %v118, 1.442695
    %v120 = vpow.pop %v119
    %v121 = vadd.f32 %v120, 1.0
    %v122 = vrcp.pop %v121
    %v123 = vmul.f32 1.0, %v122
    %125 = vrot.lane.b32.xlu0 %v114, 64
    %v126 = vpop.permute.xlu0 %125
    %v128 = vmul.f32 %v123, %v126
    %130 = vrot.lane.b32.xlu0 %v128, 64
    %v131 = vpop.permute.xlu0 %130
    %v133 = vadd.f32 %v36, %v131
    %v134 = vtanh.pop %v133
    %v135 = vsub.f32 1.0, %v123
    %137 = vrot.lane.b32.xlu0 %v134, 96
    %v138 = vpop.permute.xlu0 %137
    %v140 = vmul.f32 %v135, %v138
    %v141 = vmul.f32 %v123, 0.0
    %v142 = vadd.f32 %v140, %v141
    %144 = vrot.lane.b32.xlu0 %v142, 96
    %v145 = vpop.permute.xlu0 %144
    %vm147 = vcmask 130048
    %148 = vst.msk [vmem:[#allocation2] sm:$0xff] %vm147, %v145
    %149 = vrot.lane.b32.xlu0 %v142, 80
    %v150 = vpop.permute.xlu0 %149
    %s152 = scalar_lea.vmem [#allocation3], 56
    %153 = vst.msk [vmem:[%s152] sm:$0xff] %vm147, %v150
    %s154 = scalar_lea.vmem %s0, 8
    %v155 = vld [vmem:[%s154] sm:$0xff]
    %v156 = vsel %vm43, %v145, 0
    %158 = vmatprep.subr.mxu0 0.0
    %159 = vmatpush1.msra.mxu0 0.0
    %160 = vmatprep.subr.mxu0 0.0
    %161 = vmatpush1.msra.mxu0 0.0
    %162 = vmatprep.subr.mxu0 0.0
    %163 = vmatpush1.msra.mxu0 0.0
    %164 = vmatprep.subr.mxu0 0.0
    %165 = vmatpush1.msra.mxu0 0.0
    %166 = vmatprep.subr.mxu0 0.0
    %167 = vmatpush1.msra.mxu0 0.0
    %168 = vmatprep.subr.mxu0 0.0
    %169 = vmatpush1.msra.mxu0 0.0
    %170 = vmatprep.subr.mxu0 0.0
    %171 = vmatpush1.msra.mxu0 0.0
    %172 = vmatprep.subr.mxu0 0.0
    %173 = vmatpush1.msra.mxu0 0.0
    %174 = vmatprep.subr.mxu0 0.0
    %175 = vmatpush1.msra.mxu0 0.0
    %176 = vmatprep.subr.mxu0 0.0
    %177 = vmatpush1.msra.mxu0 0.0
    %178 = vmatprep.subr.mxu0 0.0
    %179 = vmatpush1.msra.mxu0 0.0
    %180 = vmatprep.subr.mxu0 0.0
    %181 = vmatpush1.msra.mxu0 0.0
    %182 = vmatprep.subr.mxu0 0.0
    %183 = vmatpush1.msra.mxu0 %v34
    %184 = vmatprep.subr.mxu0 0.0
    %185 = vmatpush1.msra.mxu0 %v33
    %186 = vmatprep.subr.mxu0 0.0
    %187 = vmatpush1.msra.mxu0 %v32
    %188 = vmatprep.subr.mxu0 0.0
    %189 = vmatpush1.msra.mxu0 %v31
    %190 = vmatprep.subr.mxu0 0.0
    %191 = vmatpush2.msra.mxu0 0.0
    %192 = vmatprep.subr.mxu0 0.0
    %193 = vmatpush2.msra.mxu0 0.0
    %194 = vmatprep.subr.mxu0 0.0
    %195 = vmatpush2.msra.mxu0 0.0
    %196 = vmatprep.subr.mxu0 0.0
    %197 = vmatpush2.msra.mxu0 0.0
    %198 = vmatprep.subr.mxu0 0.0
    %199 = vmatpush2.msra.mxu0 0.0
    %200 = vmatprep.subr.mxu0 0.0
    %201 = vmatpush2.msra.mxu0 0.0
    %202 = vmatprep.subr.mxu0 0.0
    %203 = vmatpush2.msra.mxu0 0.0
    %204 = vmatprep.subr.mxu0 0.0
    %205 = vmatpush2.msra.mxu0 0.0
    %206 = vmatprep.subr.mxu0 0.0
    %207 = vmatpush2.msra.mxu0 0.0
    %208 = vmatprep.subr.mxu0 0.0
    %209 = vmatpush2.msra.mxu0 0.0
    %210 = vmatprep.subr.mxu0 0.0
    %211 = vmatpush2.msra.mxu0 0.0
    %212 = vmatprep.subr.mxu0 0.0
    %213 = vmatpush2.msra.mxu0 0.0
    %214 = vmatprep.subr.mxu0 0.0
    %215 = vmatpush2.msra.mxu0 0.0
    %216 = vmatprep.subr.mxu0 0.0
    %217 = vmatpush2.msra.mxu0 0.0
    %218 = vmatprep.subr.mxu0 0.0
    %219 = vmatpush2.msra.mxu0 0.0
    %220 = vmatprep.subr.mxu0 0.0
    %221 = vmatpush2.msra.mxu0 0.0
    %222 = vmatprep.mubr.f32.mxu0 0.0
    %223 = vmatmul.mubr.f32.gmra.mxu0 %v156
    %v224 = vpop.f32.mrf.mxu0
    %v225 = vadd.f32 %v41, %v224
    %v226 = vpop.f32.mrf.mxu0
    %227 = vdwg.mxu0
    %v228 = vadd.f32 %v155, %v225
    %v229 = vxor.u32 %v228, 2147483648
    %v230 = vmul.f32 %v229, 1.442695
    %v231 = vpow.pop %v230
    %v232 = vadd.f32 %v231, 1.0
    %v233 = vrcp.pop %v232
    %v234 = vmul.f32 1.0, %v233
    %236 = vrot.lane.b32.xlu0 %v225, 64
    %v237 = vpop.permute.xlu0 %236
    %v239 = vmul.f32 %v234, %v237
    %241 = vrot.lane.b32.xlu0 %v239, 64
    %v242 = vpop.permute.xlu0 %241
    %v244 = vadd.f32 %v155, %v242
    %v245 = vtanh.pop %v244
    %v246 = vsub.f32 1.0, %v234
    %248 = vrot.lane.b32.xlu0 %v245, 96
    %v249 = vpop.permute.xlu0 %248
    %v251 = vmul.f32 %v246, %v249
    %v252 = vmul.f32 %v234, %v142
    %v253 = vadd.f32 %v251, %v252
    %255 = vrot.lane.b32.xlu0 %v253, 96
    %v256 = vpop.permute.xlu0 %255
    %s258 = scalar_lea.vmem [#allocation2], 8
    %259 = vst.msk [vmem:[%s258] sm:$0xff] %vm147, %v256
    %260 = vrot.lane.b32.xlu0 %v253, 80
    %v261 = vpop.permute.xlu0 %260
    %s263 = scalar_lea.vmem [#allocation3], 48
    %264 = vst.msk [vmem:[%s263] sm:$0xff] %vm147, %v261
    %s265 = scalar_lea.vmem %s0, 16
    %v266 = vld [vmem:[%s265] sm:$0xff]
    %v267 = vsel %vm43, %v256, 0
    %269 = vmatprep.subr.mxu0 0.0
    %270 = vmatpush1.msra.mxu0 0.0
    %271 = vmatprep.subr.mxu0 0.0
    %272 = vmatpush1.msra.mxu0 0.0
    %273 = vmatprep.subr.mxu0 0.0
    %274 = vmatpush1.msra.mxu0 0.0
    %275 = vmatprep.subr.mxu0 0.0
    %276 = vmatpush1.msra.mxu0 0.0
    %277 = vmatprep.subr.mxu0 0.0
    %278 = vmatpush1.msra.mxu0 0.0
    %279 = vmatprep.subr.mxu0 0.0
    %280 = vmatpush1.msra.mxu0 0.0
    %281 = vmatprep.subr.mxu0 0.0
    %282 = vmatpush1.msra.mxu0 0.0
    %283 = vmatprep.subr.mxu0 0.0
    %284 = vmatpush1.msra.mxu0 0.0
    %285 = vmatprep.subr.mxu0 0.0
    %286 = vmatpush1.msra.mxu0 0.0
    %287 = vmatprep.subr.mxu0 0.0
    %288 = vmatpush1.msra.mxu0 0.0
    %289 = vmatprep.subr.mxu0 0.0
    %290 = vmatpush1.msra.mxu0 0.0
    %291 = vmatprep.subr.mxu0 0.0
    %292 = vmatpush1.msra.mxu0 0.0
    %293 = vmatprep.subr.mxu0 0.0
    %294 = vmatpush1.msra.mxu0 %v34
    %295 = vmatprep.subr.mxu0 0.0
    %296 = vmatpush1.msra.mxu0 %v33
    %297 = vmatprep.subr.mxu0 0.0
    %298 = vmatpush1.msra.mxu0 %v32
    %299 = vmatprep.subr.mxu0 0.0
    %300 = vmatpush1.msra.mxu0 %v31
    %301 = vmatprep.subr.mxu0 0.0
    %302 = vmatpush2.msra.mxu0 0.0
    %303 = vmatprep.subr.mxu0 0.0
    %304 = vmatpush2.msra.mxu0 0.0
    %305 = vmatprep.subr.mxu0 0.0
    %306 = vmatpush2.msra.mxu0 0.0
    %307 = vmatprep.subr.mxu0 0.0
    %308 = vmatpush2.msra.mxu0 0.0
    %309 = vmatprep.subr.mxu0 0.0
    %310 = vmatpush2.msra.mxu0 0.0
    %311 = vmatprep.subr.mxu0 0.0
    %312 = vmatpush2.msra.mxu0 0.0
    %313 = vmatprep.subr.mxu0 0.0
    %314 = vmatpush2.msra.mxu0 0.0
    %315 = vmatprep.subr.mxu0 0.0
    %316 = vmatpush2.msra.mxu0 0.0
    %317 = vmatprep.subr.mxu0 0.0
    %318 = vmatpush2.msra.mxu0 0.0
    %319 = vmatprep.subr.mxu0 0.0
    %320 = vmatpush2.msra.mxu0 0.0
    %321 = vmatprep.subr.mxu0 0.0
    %322 = vmatpush2.msra.mxu0 0.0
    %323 = vmatprep.subr.mxu0 0.0
    %324 = vmatpush2.msra.mxu0 0.0
    %325 = vmatprep.subr.mxu0 0.0
    %326 = vmatpush2.msra.mxu0 0.0
    %327 = vmatprep.subr.mxu0 0.0
    %328 = vmatpush2.msra.mxu0 0.0
    %329 = vmatprep.subr.mxu0 0.0
    %330 = vmatpush2.msra.mxu0 0.0
    %331 = vmatprep.subr.mxu0 0.0
    %332 = vmatpush2.msra.mxu0 0.0
    %333 = vmatprep.mubr.f32.mxu0 0.0
    %334 = vmatmul.mubr.f32.gmra.mxu0 %v267
    %v335 = vpop.f32.mrf.mxu0
    %v336 = vadd.f32 %v41, %v335
    %v337 = vpop.f32.mrf.mxu0
    %338 = vdwg.mxu0
    %v339 = vadd.f32 %v266, %v336
    %v340 = vxor.u32 %v339, 2147483648
    %v341 = vmul.f32 %v340, 1.442695
    %v342 = vpow.pop %v341
    %v343 = vadd.f32 %v342, 1.0
    %v344 = vrcp.pop %v343
    %v345 = vmul.f32 1.0, %v344
    %347 = vrot.lane.b32.xlu0 %v336, 64
    %v348 = vpop.permute.xlu0 %347
    %v350 = vmul.f32 %v345, %v348
    %352 = vrot.lane.b32.xlu0 %v350, 64
    %v353 = vpop.permute.xlu0 %352
    %v355 = vadd.f32 %v266, %v353
    %v356 = vtanh.pop %v355
    %v357 = vsub.f32 1.0, %v345
    %359 = vrot.lane.b32.xlu0 %v356, 96
    %v360 = vpop.permute.xlu0 %359
    %v362 = vmul.f32 %v357, %v360
    %v363 = vmul.f32 %v345, %v253
    %v364 = vadd.f32 %v362, %v363
    %366 = vrot.lane.b32.xlu0 %v364, 96
    %v367 = vpop.permute.xlu0 %366
    %s369 = scalar_lea.vmem [#allocation2], 16
    %370 = vst.msk [vmem:[%s369] sm:$0xff] %vm147, %v367
    %371 = vrot.lane.b32.xlu0 %v364, 80
    %v372 = vpop.permute.xlu0 %371
    %s374 = scalar_lea.vmem [#allocation3], 40
    %375 = vst.msk [vmem:[%s374] sm:$0xff] %vm147, %v372
    %s376 = scalar_lea.vmem %s0, 24
    %v377 = vld [vmem:[%s376] sm:$0xff]
    %v378 = vsel %vm43, %v367, 0
    %380 = vmatprep.subr.mxu0 0.0
    %381 = vmatpush1.msra.mxu0 0.0
    %382 = vmatprep.subr.mxu0 0.0
    %383 = vmatpush1.msra.mxu0 0.0
    %384 = vmatprep.subr.mxu0 0.0
    %385 = vmatpush1.msra.mxu0 0.0
    %386 = vmatprep.subr.mxu0 0.0
    %387 = vmatpush1.msra.mxu0 0.0
    %388 = vmatprep.subr.mxu0 0.0
    %389 = vmatpush1.msra.mxu0 0.0
    %390 = vmatprep.subr.mxu0 0.0
    %391 = vmatpush1.msra.mxu0 0.0
    %392 = vmatprep.subr.mxu0 0.0
    %393 = vmatpush1.msra.mxu0 0.0
    %394 = vmatprep.subr.mxu0 0.0
    %395 = vmatpush1.msra.mxu0 0.0
    %396 = vmatprep.subr.mxu0 0.0
    %397 = vmatpush1.msra.mxu0 0.0
    %398 = vmatprep.subr.mxu0 0.0
    %399 = vmatpush1.msra.mxu0 0.0
    %400 = vmatprep.subr.mxu0 0.0
    %401 = vmatpush1.msra.mxu0 0.0
    %402 = vmatprep.subr.mxu0 0.0
    %403 = vmatpush1.msra.mxu0 0.0
    %404 = vmatprep.subr.mxu0 0.0
    %405 = vmatpush1.msra.mxu0 %v34
    %406 = vmatprep.subr.mxu0 0.0
    %407 = vmatpush1.msra.mxu0 %v33
    %408 = vmatprep.subr.mxu0 0.0
    %409 = vmatpush1.msra.mxu0 %v32
    %410 = vmatprep.subr.mxu0 0.0
    %411 = vmatpush1.msra.mxu0 %v31
    %412 = vmatprep.subr.mxu0 0.0
    %413 = vmatpush2.msra.mxu0 0.0
    %414 = vmatprep.subr.mxu0 0.0
    %415 = vmatpush2.msra.mxu0 0.0
    %416 = vmatprep.subr.mxu0 0.0
    %417 = vmatpush2.msra.mxu0 0.0
    %418 = vmatprep.subr.mxu0 0.0
    %419 = vmatpush2.msra.mxu0 0.0
    %420 = vmatprep.subr.mxu0 0.0
    %421 = vmatpush2.msra.mxu0 0.0
    %422 = vmatprep.subr.mxu0 0.0
    %423 = vmatpush2.msra.mxu0 0.0
    %424 = vmatprep.subr.mxu0 0.0
    %425 = vmatpush2.msra.mxu0 0.0
    %426 = vmatprep.subr.mxu0 0.0
    %427 = vmatpush2.msra.mxu0 0.0
    %428 = vmatprep.subr.mxu0 0.0
    %429 = vmatpush2.msra.mxu0 0.0
    %430 = vmatprep.subr.mxu0 0.0
    %431 = vmatpush2.msra.mxu0 0.0
    %432 = vmatprep.subr.mxu0 0.0
    %433 = vmatpush2.msra.mxu0 0.0
    %434 = vmatprep.subr.mxu0 0.0
    %435 = vmatpush2.msra.mxu0 0.0
    %436 = vmatprep.subr.mxu0 0.0
    %437 = vmatpush2.msra.mxu0 0.0
    %438 = vmatprep.subr.mxu0 0.0
    %439 = vmatpush2.msra.mxu0 0.0
    %440 = vmatprep.subr.mxu0 0.0
    %441 = vmatpush2.msra.mxu0 0.0
    %442 = vmatprep.subr.mxu0 0.0
    %443 = vmatpush2.msra.mxu0 0.0
    %444 = vmatprep.mubr.f32.mxu0 0.0
    %445 = vmatmul.mubr.f32.gmra.mxu0 %v378
    %v446 = vpop.f32.mrf.mxu0
    %v447 = vadd.f32 %v41, %v446
    %v448 = vpop.f32.mrf.mxu0
    %449 = vdwg.mxu0
    %v450 = vadd.f32 %v377, %v447
    %v451 = vxor.u32 %v450, 2147483648
    %v452 = vmul.f32 %v451, 1.442695
    %v453 = vpow.pop %v452
    %v454 = vadd.f32 %v453, 1.0
    %v455 = vrcp.pop %v454
    %v456 = vmul.f32 1.0, %v455
    %458 = vrot.lane.b32.xlu0 %v447, 64
    %v459 = vpop.permute.xlu0 %458
    %v461 = vmul.f32 %v456, %v459
    %463 = vrot.lane.b32.xlu0 %v461, 64
    %v464 = vpop.permute.xlu0 %463
    %v466 = vadd.f32 %v377, %v464
    %v467 = vtanh.pop %v466
    %v468 = vsub.f32 1.0, %v456
    %470 = vrot.lane.b32.xlu0 %v467, 96
    %v471 = vpop.permute.xlu0 %470
    %v473 = vmul.f32 %v468, %v471
    %v474 = vmul.f32 %v456, %v364
    %v475 = vadd.f32 %v473, %v474
    %477 = vrot.lane.b32.xlu0 %v475, 96
    %v478 = vpop.permute.xlu0 %477
    %s480 = scalar_lea.vmem [#allocation2], 24
    %481 = vst.msk [vmem:[%s480] sm:$0xff] %vm147, %v478
    %482 = vrot.lane.b32.xlu0 %v475, 80
    %v483 = vpop.permute.xlu0 %482
    %s485 = scalar_lea.vmem [#allocation3], 32
    %486 = vst.msk [vmem:[%s485] sm:$0xff] %vm147, %v483
    %s487 = scalar_lea.vmem %s0, 32
    %v488 = vld [vmem:[%s487] sm:$0xff]
    %v489 = vsel %vm43, %v478, 0
    %491 = vmatprep.subr.mxu0 0.0
    %492 = vmatpush1.msra.mxu0 0.0
    %493 = vmatprep.subr.mxu0 0.0
    %494 = vmatpush1.msra.mxu0 0.0
    %495 = vmatprep.subr.mxu0 0.0
    %496 = vmatpush1.msra.mxu0 0.0
    %497 = vmatprep.subr.mxu0 0.0
    %498 = vmatpush1.msra.mxu0 0.0
    %499 = vmatprep.subr.mxu0 0.0
    %500 = vmatpush1.msra.mxu0 0.0
    %501 = vmatprep.subr.mxu0 0.0
    %502 = vmatpush1.msra.mxu0 0.0
    %503 = vmatprep.subr.mxu0 0.0
    %504 = vmatpush1.msra.mxu0 0.0
    %505 = vmatprep.subr.mxu0 0.0
    %506 = vmatpush1.msra.mxu0 0.0
    %507 = vmatprep.subr.mxu0 0.0
    %508 = vmatpush1.msra.mxu0 0.0
    %509 = vmatprep.subr.mxu0 0.0
    %510 = vmatpush1.msra.mxu0 0.0
    %511 = vmatprep.subr.mxu0 0.0
    %512 = vmatpush1.msra.mxu0 0.0
    %513 = vmatprep.subr.mxu0 0.0
    %514 = vmatpush1.msra.mxu0 0.0
    %515 = vmatprep.subr.mxu0 0.0
    %516 = vmatpush1.msra.mxu0 %v34
    %517 = vmatprep.subr.mxu0 0.0
    %518 = vmatpush1.msra.mxu0 %v33
    %519 = vmatprep.subr.mxu0 0.0
    %520 = vmatpush1.msra.mxu0 %v32
    %521 = vmatprep.subr.mxu0 0.0
    %522 = vmatpush1.msra.mxu0 %v31
    %523 = vmatprep.subr.mxu0 0.0
    %524 = vmatpush2.msra.mxu0 0.0
    %525 = vmatprep.subr.mxu0 0.0
    %526 = vmatpush2.msra.mxu0 0.0
    %527 = vmatprep.subr.mxu0 0.0
    %528 = vmatpush2.msra.mxu0 0.0
    %529 = vmatprep.subr.mxu0 0.0
    %530 = vmatpush2.msra.mxu0 0.0
    %531 = vmatprep.subr.mxu0 0.0
    %532 = vmatpush2.msra.mxu0 0.0
    %533 = vmatprep.subr.mxu0 0.0
    %534 = vmatpush2.msra.mxu0 0.0
    %535 = vmatprep.subr.mxu0 0.0
    %536 = vmatpush2.msra.mxu0 0.0
    %537 = vmatprep.subr.mxu0 0.0
    %538 = vmatpush2.msra.mxu0 0.0
    %539 = vmatprep.subr.mxu0 0.0
    %540 = vmatpush2.msra.mxu0 0.0
    %541 = vmatprep.subr.mxu0 0.0
    %542 = vmatpush2.msra.mxu0 0.0
    %543 = vmatprep.subr.mxu0 0.0
    %544 = vmatpush2.msra.mxu0 0.0
    %545 = vmatprep.subr.mxu0 0.0
    %546 = vmatpush2.msra.mxu0 0.0
    %547 = vmatprep.subr.mxu0 0.0
    %548 = vmatpush2.msra.mxu0 0.0
    %549 = vmatprep.subr.mxu0 0.0
    %550 = vmatpush2.msra.mxu0 0.0
    %551 = vmatprep.subr.mxu0 0.0
    %552 = vmatpush2.msra.mxu0 0.0
    %553 = vmatprep.subr.mxu0 0.0
    %554 = vmatpush2.msra.mxu0 0.0
    %555 = vmatprep.mubr.f32.mxu0 0.0
    %556 = vmatmul.mubr.f32.gmra.mxu0 %v489
    %v557 = vpop.f32.mrf.mxu0
    %v558 = vadd.f32 %v41, %v557
    %v559 = vpop.f32.mrf.mxu0
    %560 = vdwg.mxu0
    %v561 = vadd.f32 %v488, %v558
    %v562 = vxor.u32 %v561, 2147483648
    %v563 = vmul.f32 %v562, 1.442695
    %v564 = vpow.pop %v563
    %v565 = vadd.f32 %v564, 1.0
    %v566 = vrcp.pop %v565
    %v567 = vmul.f32 1.0, %v566
    %569 = vrot.lane.b32.xlu0 %v558, 64
    %v570 = vpop.permute.xlu0 %569
    %v572 = vmul.f32 %v567, %v570
    %574 = vrot.lane.b32.xlu0 %v572, 64
    %v575 = vpop.permute.xlu0 %574
    %v577 = vadd.f32 %v488, %v575
    %v578 = vtanh.pop %v577
    %v579 = vsub.f32 1.0, %v567
    %581 = vrot.lane.b32.xlu0 %v578, 96
    %v582 = vpop.permute.xlu0 %581
    %v584 = vmul.f32 %v579, %v582
    %v585 = vmul.f32 %v567, %v475
    %v586 = vadd.f32 %v584, %v585
    %588 = vrot.lane.b32.xlu0 %v586, 96
    %v589 = vpop.permute.xlu0 %588
    %s591 = scalar_lea.vmem [#allocation2], 32
    %592 = vst.msk [vmem:[%s591] sm:$0xff] %vm147, %v589
    %593 = vrot.lane.b32.xlu0 %v586, 80
    %v594 = vpop.permute.xlu0 %593
    %s596 = scalar_lea.vmem [#allocation3], 24
    %597 = vst.msk [vmem:[%s596] sm:$0xff] %vm147, %v594
    %s598 = scalar_lea.vmem %s0, 40
    %v599 = vld [vmem:[%s598] sm:$0xff]
    %v600 = vsel %vm43, %v589, 0
    %602 = vmatprep.subr.mxu0 0.0
    %603 = vmatpush1.msra.mxu0 0.0
    %604 = vmatprep.subr.mxu0 0.0
    %605 = vmatpush1.msra.mxu0 0.0
    %606 = vmatprep.subr.mxu0 0.0
    %607 = vmatpush1.msra.mxu0 0.0
    %608 = vmatprep.subr.mxu0 0.0
    %609 = vmatpush1.msra.mxu0 0.0
    %610 = vmatprep.subr.mxu0 0.0
    %611 = vmatpush1.msra.mxu0 0.0
    %612 = vmatprep.subr.mxu0 0.0
    %613 = vmatpush1.msra.mxu0 0.0
    %614 = vmatprep.subr.mxu0 0.0
    %615 = vmatpush1.msra.mxu0 0.0
    %616 = vmatprep.subr.mxu0 0.0
    %617 = vmatpush1.msra.mxu0 0.0
    %618 = vmatprep.subr.mxu0 0.0
    %619 = vmatpush1.msra.mxu0 0.0
    %620 = vmatprep.subr.mxu0 0.0
    %621 = vmatpush1.msra.mxu0 0.0
    %622 = vmatprep.subr.mxu0 0.0
    %623 = vmatpush1.msra.mxu0 0.0
    %624 = vmatprep.subr.mxu0 0.0
    %625 = vmatpush1.msra.mxu0 0.0
    %626 = vmatprep.subr.mxu0 0.0
    %627 = vmatpush1.msra.mxu0 %v34
    %628 = vmatprep.subr.mxu0 0.0
    %629 = vmatpush1.msra.mxu0 %v33
    %630 = vmatprep.subr.mxu0 0.0
    %631 = vmatpush1.msra.mxu0 %v32
    %632 = vmatprep.subr.mxu0 0.0
    %633 = vmatpush1.msra.mxu0 %v31
    %634 = vmatprep.subr.mxu0 0.0
    %635 = vmatpush2.msra.mxu0 0.0
    %636 = vmatprep.subr.mxu0 0.0
    %637 = vmatpush2.msra.mxu0 0.0
    %638 = vmatprep.subr.mxu0 0.0
    %639 = vmatpush2.msra.mxu0 0.0
    %640 = vmatprep.subr.mxu0 0.0
    %641 = vmatpush2.msra.mxu0 0.0
    %642 = vmatprep.subr.mxu0 0.0
    %643 = vmatpush2.msra.mxu0 0.0
    %644 = vmatprep.subr.mxu0 0.0
    %645 = vmatpush2.msra.mxu0 0.0
    %646 = vmatprep.subr.mxu0 0.0
    %647 = vmatpush2.msra.mxu0 0.0
    %648 = vmatprep.subr.mxu0 0.0
    %649 = vmatpush2.msra.mxu0 0.0
    %650 = vmatprep.subr.mxu0 0.0
    %651 = vmatpush2.msra.mxu0 0.0
    %652 = vmatprep.subr.mxu0 0.0
    %653 = vmatpush2.msra.mxu0 0.0
    %654 = vmatprep.subr.mxu0 0.0
    %655 = vmatpush2.msra.mxu0 0.0
    %656 = vmatprep.subr.mxu0 0.0
    %657 = vmatpush2.msra.mxu0 0.0
    %658 = vmatprep.subr.mxu0 0.0
    %659 = vmatpush2.msra.mxu0 0.0
    %660 = vmatprep.subr.mxu0 0.0
    %661 = vmatpush2.msra.mxu0 0.0
    %662 = vmatprep.subr.mxu0 0.0
    %663 = vmatpush2.msra.mxu0 0.0
    %664 = vmatprep.subr.mxu0 0.0
    %665 = vmatpush2.msra.mxu0 0.0
    %666 = vmatprep.mubr.f32.mxu0 0.0
    %667 = vmatmul.mubr.f32.gmra.mxu0 %v600
    %v668 = vpop.f32.mrf.mxu0
    %v669 = vadd.f32 %v41, %v668
    %v670 = vpop.f32.mrf.mxu0
    %671 = vdwg.mxu0
    %v672 = vadd.f32 %v599, %v669
    %v673 = vxor.u32 %v672, 2147483648
    %v674 = vmul.f32 %v673, 1.442695
    %v675 = vpow.pop %v674
    %v676 = vadd.f32 %v675, 1.0
    %v677 = vrcp.pop %v676
    %v678 = vmul.f32 1.0, %v677
    %680 = vrot.lane.b32.xlu0 %v669, 64
    %v681 = vpop.permute.xlu0 %680
    %v683 = vmul.f32 %v678, %v681
    %685 = vrot.lane.b32.xlu0 %v683, 64
    %v686 = vpop.permute.xlu0 %685
    %v688 = vadd.f32 %v599, %v686
    %v689 = vtanh.pop %v688
    %v690 = vsub.f32 1.0, %v678
    %692 = vrot.lane.b32.xlu0 %v689, 96
    %v693 = vpop.permute.xlu0 %692
    %v695 = vmul.f32 %v690, %v693
    %v696 = vmul.f32 %v678, %v586
    %v697 = vadd.f32 %v695, %v696
    %699 = vrot.lane.b32.xlu0 %v697, 96
    %v700 = vpop.permute.xlu0 %699
    %s702 = scalar_lea.vmem [#allocation2], 40
    %703 = vst.msk [vmem:[%s702] sm:$0xff] %vm147, %v700
    %704 = vrot.lane.b32.xlu0 %v697, 80
    %v705 = vpop.permute.xlu0 %704
    %s707 = scalar_lea.vmem [#allocation3], 16
    %708 = vst.msk [vmem:[%s707] sm:$0xff] %vm147, %v705
    %s709 = scalar_lea.vmem %s0, 48
    %v710 = vld [vmem:[%s709] sm:$0xff]
    %v711 = vsel %vm43, %v700, 0
    %713 = vmatprep.subr.mxu0 0.0
    %714 = vmatpush1.msra.mxu0 0.0
    %715 = vmatprep.subr.mxu0 0.0
    %716 = vmatpush1.msra.mxu0 0.0
    %717 = vmatprep.subr.mxu0 0.0
    %718 = vmatpush1.msra.mxu0 0.0
    %719 = vmatprep.subr.mxu0 0.0
    %720 = vmatpush1.msra.mxu0 0.0
    %721 = vmatprep.subr.mxu0 0.0
    %722 = vmatpush1.msra.mxu0 0.0
    %723 = vmatprep.subr.mxu0 0.0
    %724 = vmatpush1.msra.mxu0 0.0
    %725 = vmatprep.subr.mxu0 0.0
    %726 = vmatpush1.msra.mxu0 0.0
    %727 = vmatprep.subr.mxu0 0.0
    %728 = vmatpush1.msra.mxu0 0.0
    %729 = vmatprep.subr.mxu0 0.0
    %730 = vmatpush1.msra.mxu0 0.0
    %731 = vmatprep.subr.mxu0 0.0
    %732 = vmatpush1.msra.mxu0 0.0
    %733 = vmatprep.subr.mxu0 0.0
    %734 = vmatpush1.msra.mxu0 0.0
    %735 = vmatprep.subr.mxu0 0.0
    %736 = vmatpush1.msra.mxu0 0.0
    %737 = vmatprep.subr.mxu0 0.0
    %738 = vmatpush1.msra.mxu0 %v34
    %739 = vmatprep.subr.mxu0 0.0
    %740 = vmatpush1.msra.mxu0 %v33
    %741 = vmatprep.subr.mxu0 0.0
    %742 = vmatpush1.msra.mxu0 %v32
    %743 = vmatprep.subr.mxu0 0.0
    %744 = vmatpush1.msra.mxu0 %v31
    %745 = vmatprep.subr.mxu0 0.0
    %746 = vmatpush2.msra.mxu0 0.0
    %747 = vmatprep.subr.mxu0 0.0
    %748 = vmatpush2.msra.mxu0 0.0
    %749 = vmatprep.subr.mxu0 0.0
    %750 = vmatpush2.msra.mxu0 0.0
    %751 = vmatprep.subr.mxu0 0.0
    %752 = vmatpush2.msra.mxu0 0.0
    %753 = vmatprep.subr.mxu0 0.0
    %754 = vmatpush2.msra.mxu0 0.0
    %755 = vmatprep.subr.mxu0 0.0
    %756 = vmatpush2.msra.mxu0 0.0
    %757 = vmatprep.subr.mxu0 0.0
    %758 = vmatpush2.msra.mxu0 0.0
    %759 = vmatprep.subr.mxu0 0.0
    %760 = vmatpush2.msra.mxu0 0.0
    %761 = vmatprep.subr.mxu0 0.0
    %762 = vmatpush2.msra.mxu0 0.0
    %763 = vmatprep.subr.mxu0 0.0
    %764 = vmatpush2.msra.mxu0 0.0
    %765 = vmatprep.subr.mxu0 0.0
    %766 = vmatpush2.msra.mxu0 0.0
    %767 = vmatprep.subr.mxu0 0.0
    %768 = vmatpush2.msra.mxu0 0.0
    %769 = vmatprep.subr.mxu0 0.0
    %770 = vmatpush2.msra.mxu0 0.0
    %771 = vmatprep.subr.mxu0 0.0
    %772 = vmatpush2.msra.mxu0 0.0
    %773 = vmatprep.subr.mxu0 0.0
    %774 = vmatpush2.msra.mxu0 0.0
    %775 = vmatprep.subr.mxu0 0.0
    %776 = vmatpush2.msra.mxu0 0.0
    %777 = vmatprep.mubr.f32.mxu0 0.0
    %778 = vmatmul.mubr.f32.gmra.mxu0 %v711
    %v779 = vpop.f32.mrf.mxu0
    %v780 = vadd.f32 %v41, %v779
    %v781 = vpop.f32.mrf.mxu0
    %782 = vdwg.mxu0
    %v783 = vadd.f32 %v710, %v780
    %v784 = vxor.u32 %v783, 2147483648
    %v785 = vmul.f32 %v784, 1.442695
    %v786 = vpow.pop %v785
    %v787 = vadd.f32 %v786, 1.0
    %v788 = vrcp.pop %v787
    %v789 = vmul.f32 1.0, %v788
    %791 = vrot.lane.b32.xlu0 %v780, 64
    %v792 = vpop.permute.xlu0 %791
    %v794 = vmul.f32 %v789, %v792
    %796 = vrot.lane.b32.xlu0 %v794, 64
    %v797 = vpop.permute.xlu0 %796
    %v799 = vadd.f32 %v710, %v797
    %v800 = vtanh.pop %v799
    %v801 = vsub.f32 1.0, %v789
    %803 = vrot.lane.b32.xlu0 %v800, 96
    %v804 = vpop.permute.xlu0 %803
    %v806 = vmul.f32 %v801, %v804
    %v807 = vmul.f32 %v789, %v697
    %v808 = vadd.f32 %v806, %v807
    %810 = vrot.lane.b32.xlu0 %v808, 96
    %v811 = vpop.permute.xlu0 %810
    %s813 = scalar_lea.vmem [#allocation2], 48
    %814 = vst.msk [vmem:[%s813] sm:$0xff] %vm147, %v811
    %815 = vrot.lane.b32.xlu0 %v808, 80
    %v816 = vpop.permute.xlu0 %815
    %s818 = scalar_lea.vmem [#allocation3], 8
    %819 = vst.msk [vmem:[%s818] sm:$0xff] %vm147, %v816
    %s820 = scalar_lea.vmem %s0, 56
    %v821 = vld [vmem:[%s820] sm:$0xff]
    %v822 = vsel %vm43, %v811, 0
    %824 = vmatprep.subr.mxu0 0.0
    %825 = vmatpush1.msra.mxu0 0.0
    %826 = vmatprep.subr.mxu0 0.0
    %827 = vmatpush1.msra.mxu0 0.0
    %828 = vmatprep.subr.mxu0 0.0
    %829 = vmatpush1.msra.mxu0 0.0
    %830 = vmatprep.subr.mxu0 0.0
    %831 = vmatpush1.msra.mxu0 0.0
    %832 = vmatprep.subr.mxu0 0.0
    %833 = vmatpush1.msra.mxu0 0.0
    %834 = vmatprep.subr.mxu0 0.0
    %835 = vmatpush1.msra.mxu0 0.0
    %836 = vmatprep.subr.mxu0 0.0
    %837 = vmatpush1.msra.mxu0 0.0
    %838 = vmatprep.subr.mxu0 0.0
    %839 = vmatpush1.msra.mxu0 0.0
    %840 = vmatprep.subr.mxu0 0.0
    %841 = vmatpush1.msra.mxu0 0.0
    %842 = vmatprep.subr.mxu0 0.0
    %843 = vmatpush1.msra.mxu0 0.0
    %844 = vmatprep.subr.mxu0 0.0
    %845 = vmatpush1.msra.mxu0 0.0
    %846 = vmatprep.subr.mxu0 0.0
    %847 = vmatpush1.msra.mxu0 0.0
    %848 = vmatprep.subr.mxu0 0.0
    %849 = vmatpush1.msra.mxu0 %v34
    %850 = vmatprep.subr.mxu0 0.0
    %851 = vmatpush1.msra.mxu0 %v33
    %852 = vmatprep.subr.mxu0 0.0
    %853 = vmatpush1.msra.mxu0 %v32
    %854 = vmatprep.subr.mxu0 0.0
    %855 = vmatpush1.msra.mxu0 %v31
    %856 = vmatprep.subr.mxu0 0.0
    %857 = vmatpush2.msra.mxu0 0.0
    %858 = vmatprep.subr.mxu0 0.0
    %859 = vmatpush2.msra.mxu0 0.0
    %860 = vmatprep.subr.mxu0 0.0
    %861 = vmatpush2.msra.mxu0 0.0
    %862 = vmatprep.subr.mxu0 0.0
    %863 = vmatpush2.msra.mxu0 0.0
    %864 = vmatprep.subr.mxu0 0.0
    %865 = vmatpush2.msra.mxu0 0.0
    %866 = vmatprep.subr.mxu0 0.0
    %867 = vmatpush2.msra.mxu0 0.0
    %868 = vmatprep.subr.mxu0 0.0
    %869 = vmatpush2.msra.mxu0 0.0
    %870 = vmatprep.subr.mxu0 0.0
    %871 = vmatpush2.msra.mxu0 0.0
    %872 = vmatprep.subr.mxu0 0.0
    %873 = vmatpush2.msra.mxu0 0.0
    %874 = vmatprep.subr.mxu0 0.0
    %875 = vmatpush2.msra.mxu0 0.0
    %876 = vmatprep.subr.mxu0 0.0
    %877 = vmatpush2.msra.mxu0 0.0
    %878 = vmatprep.subr.mxu0 0.0
    %879 = vmatpush2.msra.mxu0 0.0
    %880 = vmatprep.subr.mxu0 0.0
    %881 = vmatpush2.msra.mxu0 0.0
    %882 = vmatprep.subr.mxu0 0.0
    %883 = vmatpush2.msra.mxu0 0.0
    %884 = vmatprep.subr.mxu0 0.0
    %885 = vmatpush2.msra.mxu0 0.0
    %886 = vmatprep.subr.mxu0 0.0
    %887 = vmatpush2.msra.mxu0 0.0
    %888 = vmatprep.mubr.f32.mxu0 0.0
    %889 = vmatmul.mubr.f32.gmra.mxu0 %v822
    %v890 = vpop.f32.mrf.mxu0
    %v891 = vadd.f32 %v41, %v890
    %v892 = vpop.f32.mrf.mxu0
    %893 = vdwg.mxu0
    %v894 = vadd.f32 %v821, %v891
    %v895 = vxor.u32 %v894, 2147483648
    %v896 = vmul.f32 %v895, 1.442695
    %v897 = vpow.pop %v896
    %v898 = vadd.f32 %v897, 1.0
    %v899 = vrcp.pop %v898
    %v900 = vmul.f32 1.0, %v899
    %902 = vrot.lane.b32.xlu0 %v891, 64
    %v903 = vpop.permute.xlu0 %902
    %v905 = vmul.f32 %v900, %v903
    %907 = vrot.lane.b32.xlu0 %v905, 64
    %v908 = vpop.permute.xlu0 %907
    %v910 = vadd.f32 %v821, %v908
    %v911 = vtanh.pop %v910
    %v912 = vsub.f32 1.0, %v900
    %914 = vrot.lane.b32.xlu0 %v911, 96
    %v915 = vpop.permute.xlu0 %914
    %v917 = vmul.f32 %v912, %v915
    %v918 = vmul.f32 %v900, %v808
    %v919 = vadd.f32 %v917, %v918
    %921 = vrot.lane.b32.xlu0 %v919, 96
    %v922 = vpop.permute.xlu0 %921
    %s924 = scalar_lea.vmem [#allocation2], 56
    %925 = vst.msk [vmem:[%s924] sm:$0xff] %vm147, %v922
    %926 = vrot.lane.b32.xlu0 %v919, 80
    %v927 = vpop.permute.xlu0 %926
    %929 = vst.msk [vmem:[#allocation3] sm:$0xff] %vm147, %v927
    %v930 = vld [vmem:[#allocation2] sm:$0xff]
    %v931 = vld [vmem:[#allocation2 + $0x8] sm:$0xff]
    %v932 = vld [vmem:[#allocation2 + $0x10] sm:$0xff]
    %v933 = vld [vmem:[#allocation2 + $0x18] sm:$0xff]
    %v934 = vld [vmem:[#allocation2 + $0x20] sm:$0xff]
    %v935 = vld [vmem:[#allocation2 + $0x28] sm:$0xff]
    %v936 = vld [vmem:[#allocation2 + $0x30] sm:$0xff]
    %v937 = vld [vmem:[#allocation2 + $0x38] sm:$0xff]
    %v938 = vld [vmem:[%s3] sm:$0xff]
    %v939 = vld [vmem:[%s3 + $0x8] sm:$0xff]
    %v940 = vld [vmem:[#allocation3] sm:$0xff]
    %v941 = vld [vmem:[#allocation3 + $0x8] sm:$0xff]
    %v942 = vld [vmem:[#allocation3 + $0x10] sm:$0xff]
    %v943 = vld [vmem:[#allocation3 + $0x18] sm:$0xff]
    %v944 = vld [vmem:[#allocation3 + $0x20] sm:$0xff]
    %v945 = vld [vmem:[#allocation3 + $0x28] sm:$0xff]
    %v946 = vld [vmem:[#allocation3 + $0x30] sm:$0xff]
    %v947 = vld [vmem:[#allocation3 + $0x38] sm:$0xff]
    %v948 = vld [vmem:[%s4] sm:$0xff]
    %v949 = vld [vmem:[%s4 + $0x8] sm:$0xff]
    %v951 = vsel %vm147, %v940, 0
    %v954 = vsel %vm147, %v941, 0
    %v957 = vsel %vm147, %v942, 0
    %v960 = vsel %vm147, %v943, 0
    %v963 = vsel %vm147, %v944, 0
    %v966 = vsel %vm147, %v945, 0
    %v969 = vsel %vm147, %v946, 0
    %v972 = vsel %vm147, %v947, 0
    %974 = vmatprep.subr.mxu0 0.0
    %975 = vmatpush1.msra.mxu0 0.0
    %976 = vmatprep.subr.mxu0 0.0
    %977 = vmatpush1.msra.mxu0 0.0
    %978 = vmatprep.subr.mxu0 0.0
    %979 = vmatpush1.msra.mxu0 0.0
    %980 = vmatprep.subr.mxu0 0.0
    %981 = vmatpush1.msra.mxu0 0.0
    %982 = vmatprep.subr.mxu0 0.0
    %983 = vmatpush1.msra.mxu0 0.0
    %984 = vmatprep.subr.mxu0 0.0
    %985 = vmatpush1.msra.mxu0 0.0
    %986 = vmatprep.subr.mxu0 0.0
    %987 = vmatpush1.msra.mxu0 0.0
    %988 = vmatprep.subr.mxu0 0.0
    %989 = vmatpush1.msra.mxu0 0.0
    %990 = vmatprep.subr.mxu0 0.0
    %991 = vmatpush1.msra.mxu0 0.0
    %992 = vmatprep.subr.mxu0 0.0
    %993 = vmatpush1.msra.mxu0 0.0
    %994 = vmatprep.subr.mxu0 0.0
    %995 = vmatpush1.msra.mxu0 0.0
    %996 = vmatprep.subr.mxu0 0.0
    %997 = vmatpush1.msra.mxu0 0.0
    %998 = vmatprep.subr.mxu0 0.0
    %999 = vmatpush1.msra.mxu0 0.0
    %1000 = vmatprep.subr.mxu0 0.0
    %1001 = vmatpush1.msra.mxu0 0.0
    %1002 = vmatprep.subr.mxu0 0.0
    %1003 = vmatpush1.msra.mxu0 %v949
    %1004 = vmatprep.subr.mxu0 0.0
    %1005 = vmatpush1.msra.mxu0 %v948
    %1006 = vmatprep.subr.mxu0 0.0
    %1007 = vmatpush2.msra.mxu0 0.0
    %1008 = vmatprep.subr.mxu0 0.0
    %1009 = vmatpush2.msra.mxu0 0.0
    %1010 = vmatprep.subr.mxu0 0.0
    %1011 = vmatpush2.msra.mxu0 0.0
    %1012 = vmatprep.subr.mxu0 0.0
    %1013 = vmatpush2.msra.mxu0 0.0
    %1014 = vmatprep.subr.mxu0 0.0
    %1015 = vmatpush2.msra.mxu0 0.0
    %1016 = vmatprep.subr.mxu0 0.0
    %1017 = vmatpush2.msra.mxu0 0.0
    %1018 = vmatprep.subr.mxu0 0.0
    %1019 = vmatpush2.msra.mxu0 0.0
    %1020 = vmatprep.subr.mxu0 0.0
    %1021 = vmatpush2.msra.mxu0 0.0
    %1022 = vmatprep.subr.mxu0 0.0
    %1023 = vmatpush2.msra.mxu0 0.0
    %1024 = vmatprep.subr.mxu0 0.0
    %1025 = vmatpush2.msra.mxu0 0.0
    %1026 = vmatprep.subr.mxu0 0.0
    %1027 = vmatpush2.msra.mxu0 0.0
    %1028 = vmatprep.subr.mxu0 0.0
    %1029 = vmatpush2.msra.mxu0 0.0
    %1030 = vmatprep.subr.mxu0 0.0
    %1031 = vmatpush2.msra.mxu0 0.0
    %1032 = vmatprep.subr.mxu0 0.0
    %1033 = vmatpush2.msra.mxu0 0.0
    %1034 = vmatprep.subr.mxu0 0.0
    %1035 = vmatpush2.msra.mxu0 0.0
    %1036 = vmatprep.subr.mxu0 0.0
    %1037 = vmatpush2.msra.mxu0 0.0
    %1038 = vmatprep.mubr.f32.mxu0 0.0
    %1039 = vmatmul.mubr.f32.gmra.mxu0 %v951
    %v1040 = vpop.f32.mrf.mxu0
    %v1041 = vadd.f32 0.0, %v1040
    %v1042 = vpop.f32.mrf.mxu0
    %1043 = vmatprep.mubr.f32.mxu0 0.0
    %1044 = vmatmul.mubr.f32.gmra.mxu0 %v954
    %v1045 = vpop.f32.mrf.mxu0
    %v1046 = vadd.f32 0.0, %v1045
    %v1047 = vpop.f32.mrf.mxu0
    %1048 = vmatprep.mubr.f32.mxu0 0.0
    %1049 = vmatmul.mubr.f32.gmra.mxu0 %v957
    %v1050 = vpop.f32.mrf.mxu0
    %v1051 = vadd.f32 0.0, %v1050
    %v1052 = vpop.f32.mrf.mxu0
    %1053 = vmatprep.mubr.f32.mxu0 0.0
    %1054 = vmatmul.mubr.f32.gmra.mxu0 %v960
    %v1055 = vpop.f32.mrf.mxu0
    %v1056 = vadd.f32 0.0, %v1055
    %v1057 = vpop.f32.mrf.mxu0
    %1058 = vmatprep.mubr.f32.mxu0 0.0
    %1059 = vmatmul.mubr.f32.gmra.mxu0 %v963
    %v1060 = vpop.f32.mrf.mxu0
    %v1061 = vadd.f32 0.0, %v1060
    %v1062 = vpop.f32.mrf.mxu0
    %1063 = vmatprep.mubr.f32.mxu0 0.0
    %1064 = vmatmul.mubr.f32.gmra.mxu0 %v966
    %v1065 = vpop.f32.mrf.mxu0
    %v1066 = vadd.f32 0.0, %v1065
    %v1067 = vpop.f32.mrf.mxu0
    %1068 = vmatprep.mubr.f32.mxu0 0.0
    %1069 = vmatmul.mubr.f32.gmra.mxu0 %v969
    %v1070 = vpop.f32.mrf.mxu0
    %v1071 = vadd.f32 0.0, %v1070
    %v1072 = vpop.f32.mrf.mxu0
    %1073 = vmatprep.mubr.f32.mxu0 0.0
    %1074 = vmatmul.mubr.f32.gmra.mxu0 %v972
    %v1075 = vpop.f32.mrf.mxu0
    %v1076 = vadd.f32 0.0, %v1075
    %v1077 = vpop.f32.mrf.mxu0
    %1078 = vdwg.mxu0
    %v1080 = vsel %vm147, %v930, 0
    %v1083 = vsel %vm147, %v931, 0
    %v1086 = vsel %vm147, %v932, 0
    %v1089 = vsel %vm147, %v933, 0
    %v1092 = vsel %vm147, %v934, 0
    %v1095 = vsel %vm147, %v935, 0
    %v1098 = vsel %vm147, %v936, 0
    %v1101 = vsel %vm147, %v937, 0
    %1103 = vmatprep.subr.mxu0 0.0
    %1104 = vmatpush1.msra.mxu0 0.0
    %1105 = vmatprep.subr.mxu0 0.0
    %1106 = vmatpush1.msra.mxu0 0.0
    %1107 = vmatprep.subr.mxu0 0.0
    %1108 = vmatpush1.msra.mxu0 0.0
    %1109 = vmatprep.subr.mxu0 0.0
    %1110 = vmatpush1.msra.mxu0 0.0
    %1111 = vmatprep.subr.mxu0 0.0
    %1112 = vmatpush1.msra.mxu0 0.0
    %1113 = vmatprep.subr.mxu0 0.0
    %1114 = vmatpush1.msra.mxu0 0.0
    %1115 = vmatprep.subr.mxu0 0.0
    %1116 = vmatpush1.msra.mxu0 0.0
    %1117 = vmatprep.subr.mxu0 0.0
    %1118 = vmatpush1.msra.mxu0 0.0
    %1119 = vmatprep.subr.mxu0 0.0
    %1120 = vmatpush1.msra.mxu0 0.0
    %1121 = vmatprep.subr.mxu0 0.0
    %1122 = vmatpush1.msra.mxu0 0.0
    %1123 = vmatprep.subr.mxu0 0.0
    %1124 = vmatpush1.msra.mxu0 0.0
    %1125 = vmatprep.subr.mxu0 0.0
    %1126 = vmatpush1.msra.mxu0 0.0
    %1127 = vmatprep.subr.mxu0 0.0
    %1128 = vmatpush1.msra.mxu0 0.0
    %1129 = vmatprep.subr.mxu0 0.0
    %1130 = vmatpush1.msra.mxu0 0.0
    %1131 = vmatprep.subr.mxu0 0.0
    %1132 = vmatpush1.msra.mxu0 %v939
    %1133 = vmatprep.subr.mxu0 0.0
    %1134 = vmatpush1.msra.mxu0 %v938
    %1135 = vmatprep.subr.mxu0 0.0
    %1136 = vmatpush2.msra.mxu0 0.0
    %1137 = vmatprep.subr.mxu0 0.0
    %1138 = vmatpush2.msra.mxu0 0.0
    %1139 = vmatprep.subr.mxu0 0.0
    %1140 = vmatpush2.msra.mxu0 0.0
    %1141 = vmatprep.subr.mxu0 0.0
    %1142 = vmatpush2.msra.mxu0 0.0
    %1143 = vmatprep.subr.mxu0 0.0
    %1144 = vmatpush2.msra.mxu0 0.0
    %1145 = vmatprep.subr.mxu0 0.0
    %1146 = vmatpush2.msra.mxu0 0.0
    %1147 = vmatprep.subr.mxu0 0.0
    %1148 = vmatpush2.msra.mxu0 0.0
    %1149 = vmatprep.subr.mxu0 0.0
    %1150 = vmatpush2.msra.mxu0 0.0
    %1151 = vmatprep.subr.mxu0 0.0
    %1152 = vmatpush2.msra.mxu0 0.0
    %1153 = vmatprep.subr.mxu0 0.0
    %1154 = vmatpush2.msra.mxu0 0.0
    %1155 = vmatprep.subr.mxu0 0.0
    %1156 = vmatpush2.msra.mxu0 0.0
    %1157 = vmatprep.subr.mxu0 0.0
    %1158 = vmatpush2.msra.mxu0 0.0
    %1159 = vmatprep.subr.mxu0 0.0
    %1160 = vmatpush2.msra.mxu0 0.0
    %1161 = vmatprep.subr.mxu0 0.0
    %1162 = vmatpush2.msra.mxu0 0.0
    %1163 = vmatprep.subr.mxu0 0.0
    %1164 = vmatpush2.msra.mxu0 0.0
    %1165 = vmatprep.subr.mxu0 0.0
    %1166 = vmatpush2.msra.mxu0 0.0
    %1167 = vmatprep.mubr.f32.mxu0 0.0
    %1168 = vmatmul.mubr.f32.gmra.mxu0 %v1080
    %v1169 = vpop.f32.mrf.mxu0
    %v1170 = vadd.f32 %v1041, %v1169
    %v1171 = vpop.f32.mrf.mxu0
    %1172 = vmatprep.mubr.f32.mxu0 0.0
    %1173 = vmatmul.mubr.f32.gmra.mxu0 %v1083
    %v1174 = vpop.f32.mrf.mxu0
    %v1175 = vadd.f32 %v1046, %v1174
    %v1176 = vpop.f32.mrf.mxu0
    %1177 = vmatprep.mubr.f32.mxu0 0.0
    %1178 = vmatmul.mubr.f32.gmra.mxu0 %v1086
    %v1179 = vpop.f32.mrf.mxu0
    %v1180 = vadd.f32 %v1051, %v1179
    %v1181 = vpop.f32.mrf.mxu0
    %1182 = vmatprep.mubr.f32.mxu0 0.0
    %1183 = vmatmul.mubr.f32.gmra.mxu0 %v1089
    %v1184 = vpop.f32.mrf.mxu0
    %v1185 = vadd.f32 %v1056, %v1184
    %v1186 = vpop.f32.mrf.mxu0
    %1187 = vmatprep.mubr.f32.mxu0 0.0
    %1188 = vmatmul.mubr.f32.gmra.mxu0 %v1092
    %v1189 = vpop.f32.mrf.mxu0
    %v1190 = vadd.f32 %v1061, %v1189
    %v1191 = vpop.f32.mrf.mxu0
    %1192 = vmatprep.mubr.f32.mxu0 0.0
    %1193 = vmatmul.mubr.f32.gmra.mxu0 %v1095
    %v1194 = vpop.f32.mrf.mxu0
    %v1195 = vadd.f32 %v1066, %v1194
    %v1196 = vpop.f32.mrf.mxu0
    %1197 = vmatprep.mubr.f32.mxu0 0.0
    %1198 = vmatmul.mubr.f32.gmra.mxu0 %v1098
    %v1199 = vpop.f32.mrf.mxu0
    %v1200 = vadd.f32 %v1071, %v1199
    %v1201 = vpop.f32.mrf.mxu0
    %1202 = vmatprep.mubr.f32.mxu0 0.0
    %1203 = vmatmul.mubr.f32.gmra.mxu0 %v1101
    %v1204 = vpop.f32.mrf.mxu0
    %v1205 = vadd.f32 %v1076, %v1204
    %v1206 = vpop.f32.mrf.mxu0
    %1207 = vdwg.mxu0
    %v1208 = vld [vmem:[%s5] sm:$0x1]
    %v1210 = vlaneseq
    %v1211 = vshrl.u32 %v1210, 7
    %v1212 = vsub.s32 0, %v1211
    %v1213 = vrot.slane %v1208, %v1212
    %v1215 = vadd.f32 %v1170, %v1213
    %v1216 = vadd.f32 %v1175, %v1213
    %v1217 = vadd.f32 %v1180, %v1213
    %v1218 = vadd.f32 %v1185, %v1213
    %v1219 = vadd.f32 %v1190, %v1213
    %v1220 = vadd.f32 %v1195, %v1213
    %v1221 = vadd.f32 %v1200, %v1213
    %v1222 = vadd.f32 %v1205, %v1213
    %vm1223 = vcmask 56320
    %v1224 = vsel %vm1223, %v1215, -inf
    %1225 = vmax.xlane.f32.xlu0 %v1224
    %v1226 = vpop.xlane.xlu0 %1225
    %v1227 = vsel %vm1223, %v1216, -inf
    %1228 = vmax.xlane.f32.xlu0 %v1227
    %v1229 = vpop.xlane.xlu0 %1228
    %v1230 = vsel %vm1223, %v1217, -inf
    %1231 = vmax.xlane.f32.xlu0 %v1230
    %v1232 = vpop.xlane.xlu0 %1231
    %v1233 = vsel %vm1223, %v1218, -inf
    %1234 = vmax.xlane.f32.xlu0 %v1233
    %v1235 = vpop.xlane.xlu0 %1234
    %v1236 = vsel %vm1223, %v1219, -inf
    %1237 = vmax.xlane.f32.xlu0 %v1236
    %v1238 = vpop.xlane.xlu0 %1237
    %v1239 = vsel %vm1223, %v1220, -inf
    %1240 = vmax.xlane.f32.xlu0 %v1239
    %v1241 = vpop.xlane.xlu0 %1240
    %v1242 = vsel %vm1223, %v1221, -inf
    %1243 = vmax.xlane.f32.xlu0 %v1242
    %v1244 = vpop.xlane.xlu0 %1243
    %v1245 = vsel %vm1223, %v1222, -inf
    %1246 = vmax.xlane.f32.xlu0 %v1245
    %v1247 = vpop.xlane.xlu0 %1246
    %v1248 = vsub.f32 %v1215, %v1226
    %v1249 = vsub.f32 %v1216, %v1229
    %v1250 = vsub.f32 %v1217, %v1232
    %v1251 = vsub.f32 %v1218, %v1235
    %v1252 = vsub.f32 %v1219, %v1238
    %v1253 = vsub.f32 %v1220, %v1241
    %v1254 = vsub.f32 %v1221, %v1244
    %v1255 = vsub.f32 %v1222, %v1247
    %v1256 = vmul.f32 %v1248, 1.442695
    %v1257 = vpow.pop %v1256
    %v1258 = vmul.f32 %v1249, 1.442695
    %v1259 = vpow.pop %v1258
    %v1260 = vmul.f32 %v1250, 1.442695
    %v1261 = vpow.pop %v1260
    %v1262 = vmul.f32 %v1251, 1.442695
    %v1263 = vpow.pop %v1262
    %v1264 = vmul.f32 %v1252, 1.442695
    %v1265 = vpow.pop %v1264
    %v1266 = vmul.f32 %v1253, 1.442695
    %v1267 = vpow.pop %v1266
    %v1268 = vmul.f32 %v1254, 1.442695
    %v1269 = vpow.pop %v1268
    %v1270 = vmul.f32 %v1255, 1.442695
    %v1271 = vpow.pop %v1270
    %v1272 = vsel %vm1223, %v1257, 0.0
    %1273 = vadd.xlane.f32.xlu0 %v1272
    %v1274 = vpop.xlane.xlu0 %1273
    %v1275 = vsel %vm1223, %v1259, 0.0
    %1276 = vadd.xlane.f32.xlu0 %v1275
    %v1277 = vpop.xlane.xlu0 %1276
    %v1278 = vsel %vm1223, %v1261, 0.0
    %1279 = vadd.xlane.f32.xlu0 %v1278
    %v1280 = vpop.xlane.xlu0 %1279
    %v1281 = vsel %vm1223, %v1263, 0.0
    %1282 = vadd.xlane.f32.xlu0 %v1281
    %v1283 = vpop.xlane.xlu0 %1282
    %v1284 = vsel %vm1223, %v1265, 0.0
    %1285 = vadd.xlane.f32.xlu0 %v1284
    %v1286 = vpop.xlane.xlu0 %1285
    %v1287 = vsel %vm1223, %v1267, 0.0
    %1288 = vadd.xlane.f32.xlu0 %v1287
    %v1289 = vpop.xlane.xlu0 %1288
    %v1290 = vsel %vm1223, %v1269, 0.0
    %1291 = vadd.xlane.f32.xlu0 %v1290
    %v1292 = vpop.xlane.xlu0 %1291
    %v1293 = vsel %vm1223, %v1271, 0.0
    %1294 = vadd.xlane.f32.xlu0 %v1293
    %v1295 = vpop.xlane.xlu0 %1294
    %v1296 = vlog2.pop %v1274
    %v1297 = vmul.f32 %v1296, 0.6931472
    %v1298 = vlog2.pop %v1277
    %v1299 = vmul.f32 %v1298, 0.6931472
    %v1300 = vlog2.pop %v1280
    %v1301 = vmul.f32 %v1300, 0.6931472
    %v1302 = vlog2.pop %v1283
    %v1303 = vmul.f32 %v1302, 0.6931472
    %v1304 = vlog2.pop %v1286
    %v1305 = vmul.f32 %v1304, 0.6931472
    %v1306 = vlog2.pop %v1289
    %v1307 = vmul.f32 %v1306, 0.6931472
    %v1308 = vlog2.pop %v1292
    %v1309 = vmul.f32 %v1308, 0.6931472
    %v1310 = vlog2.pop %v1295
    %v1311 = vmul.f32 %v1310, 0.6931472
    %v1312 = vsub.f32 %v1248, %v1297
    %v1313 = vsub.f32 %v1249, %v1299
    %v1314 = vsub.f32 %v1250, %v1301
    %v1315 = vsub.f32 %v1251, %v1303
    %v1316 = vsub.f32 %v1252, %v1305
    %v1317 = vsub.f32 %v1253, %v1307
    %v1318 = vsub.f32 %v1254, %v1309
    %v1319 = vsub.f32 %v1255, %v1311
    %v1320 = vld [vmem:[%s6] sm:$0xff]
    %v1321 = vld [vmem:[%s6 + $0x8] sm:$0xff]
    %v1322 = vld [vmem:[%s6 + $0x10] sm:$0xff]
    %v1323 = vld [vmem:[%s6 + $0x18] sm:$0xff]
    %v1324 = vld [vmem:[%s6 + $0x20] sm:$0xff]
    %v1325 = vld [vmem:[%s6 + $0x28] sm:$0xff]
    %v1326 = vld [vmem:[%s6 + $0x30] sm:$0xff]
    %v1327 = vld [vmem:[%s6 + $0x38] sm:$0xff]
    %v1328 = vlaneseq
    %v1329 = vand.u32 %v1328, 127
    %1330 = vset.pattern.permute.xlu0 0
    %1331 = vperm.xlu0 %1330, %v1320
    %v1332 = vpop.permute.xlu0 %1331
    %1333 = vset.pattern.permute.xlu0 0
    %1334 = vperm.xlu0 %1333, %v1321
    %v1335 = vpop.permute.xlu0 %1334
    %1336 = vset.pattern.permute.xlu0 0
    %1337 = vperm.xlu0 %1336, %v1322
    %v1338 = vpop.permute.xlu0 %1337
    %1339 = vset.pattern.permute.xlu0 0
    %1340 = vperm.xlu0 %1339, %v1323
    %v1341 = vpop.permute.xlu0 %1340
    %1342 = vset.pattern.permute.xlu0 0
    %1343 = vperm.xlu0 %1342, %v1324
    %v1344 = vpop.permute.xlu0 %1343
    %1345 = vset.pattern.permute.xlu0 0
    %1346 = vperm.xlu0 %1345, %v1325
    %v1347 = vpop.permute.xlu0 %1346
    %1348 = vset.pattern.permute.xlu0 0
    %1349 = vperm.xlu0 %1348, %v1326
    %v1350 = vpop.permute.xlu0 %1349
    %1351 = vset.pattern.permute.xlu0 0
    %1352 = vperm.xlu0 %1351, %v1327
    %v1353 = vpop.permute.xlu0 %1352
    %vm1354 = vcmp.eq.s32.totalorder %v1329, %v1332
    %vm1355 = vcmp.eq.s32.totalorder %v1329, %v1335
    %vm1356 = vcmp.eq.s32.totalorder %v1329, %v1338
    %vm1357 = vcmp.eq.s32.totalorder %v1329, %v1341
    %vm1358 = vcmp.eq.s32.totalorder %v1329, %v1344
    %vm1359 = vcmp.eq.s32.totalorder %v1329, %v1347
    %vm1360 = vcmp.eq.s32.totalorder %v1329, %v1350
    %vm1361 = vcmp.eq.s32.totalorder %v1329, %v1353
    %v1362 = vsel %vm1354, 1, 0
    %v1363 = vsel %vm1355, 1, 0
    %v1364 = vsel %vm1356, 1, 0
    %v1365 = vsel %vm1357, 1, 0
    %v1366 = vsel %vm1358, 1, 0
    %v1367 = vsel %vm1359, 1, 0
    %v1368 = vsel %vm1360, 1, 0
    %v1369 = vsel %vm1361, 1, 0
    %v1370 = vcvt.s32.f32 %v1362
    %v1371 = vcvt.s32.f32 %v1363
    %v1372 = vcvt.s32.f32 %v1364
    %v1373 = vcvt.s32.f32 %v1365
    %v1374 = vcvt.s32.f32 %v1366
    %v1375 = vcvt.s32.f32 %v1367
    %v1376 = vcvt.s32.f32 %v1368
    %v1377 = vcvt.s32.f32 %v1369
    %vm1378 = vcmp.gt.s32.totalorder %v1320, 0
    %vm1379 = vcmp.gt.s32.totalorder %v1321, 0
    %vm1380 = vcmp.gt.s32.totalorder %v1322, 0
    %vm1381 = vcmp.gt.s32.totalorder %v1323, 0
    %vm1382 = vcmp.gt.s32.totalorder %v1324, 0
    %vm1383 = vcmp.gt.s32.totalorder %v1325, 0
    %vm1384 = vcmp.gt.s32.totalorder %v1326, 0
    %vm1385 = vcmp.gt.s32.totalorder %v1327, 0
    %v1386 = vsel %vm1378, 1, 0
    %v1387 = vsel %vm1379, 1, 0
    %v1388 = vsel %vm1380, 1, 0
    %v1389 = vsel %vm1381, 1, 0
    %v1390 = vsel %vm1382, 1, 0
    %v1391 = vsel %vm1383, 1, 0
    %v1392 = vsel %vm1384, 1, 0
    %v1393 = vsel %vm1385, 1, 0
    %v1394 = vcvt.s32.f32 %v1386
    %v1395 = vcvt.s32.f32 %v1387
    %v1396 = vcvt.s32.f32 %v1388
    %v1397 = vcvt.s32.f32 %v1389
    %v1398 = vcvt.s32.f32 %v1390
    %v1399 = vcvt.s32.f32 %v1391
    %v1400 = vcvt.s32.f32 %v1392
    %v1401 = vcvt.s32.f32 %v1393
    %v1402 = vmul.f32 %v1370, %v1312
    %v1403 = vmul.f32 %v1371, %v1313
    %v1404 = vmul.f32 %v1372, %v1314
    %v1405 = vmul.f32 %v1373, %v1315
    %v1406 = vmul.f32 %v1374, %v1316
    %v1407 = vmul.f32 %v1375, %v1317
    %v1408 = vmul.f32 %v1376, %v1318
    %v1409 = vmul.f32 %v1377, %v1319
    %v1410 = vsel %vm1223, %v1402, 0.0
    %1411 = vadd.xlane.f32.xlu0 %v1410
    %v1412 = vpop.xlane.xlu0 %1411
    %v1413 = vsel %vm1223, %v1403, 0.0
    %1414 = vadd.xlane.f32.xlu0 %v1413
    %v1415 = vpop.xlane.xlu0 %1414
    %v1416 = vsel %vm1223, %v1404, 0.0
    %1417 = vadd.xlane.f32.xlu0 %v1416
    %v1418 = vpop.xlane.xlu0 %1417
    %v1419 = vsel %vm1223, %v1405, 0.0
    %1420 = vadd.xlane.f32.xlu0 %v1419
    %v1421 = vpop.xlane.xlu0 %1420
    %v1422 = vsel %vm1223, %v1406, 0.0
    %1423 = vadd.xlane.f32.xlu0 %v1422
    %v1424 = vpop.xlane.xlu0 %1423
    %v1425 = vsel %vm1223, %v1407, 0.0
    %1426 = vadd.xlane.f32.xlu0 %v1425
    %v1427 = vpop.xlane.xlu0 %1426
    %v1428 = vsel %vm1223, %v1408, 0.0
    %1429 = vadd.xlane.f32.xlu0 %v1428
    %v1430 = vpop.xlane.xlu0 %1429
    %v1431 = vsel %vm1223, %v1409, 0.0
    %1432 = vadd.xlane.f32.xlu0 %v1431
    %v1433 = vpop.xlane.xlu0 %1432
    %v1434 = vmul.f32 %v1412, 0.9
    %v1435 = vmul.f32 %v1415, 0.9
    %v1436 = vmul.f32 %v1418, 0.9
    %v1437 = vmul.f32 %v1421, 0.9
    %v1438 = vmul.f32 %v1424, 0.9
    %v1439 = vmul.f32 %v1427, 0.9
    %v1440 = vmul.f32 %v1430, 0.9
    %v1441 = vmul.f32 %v1433, 0.9
    %v1442 = vsel %vm1223, %v1312, 0.0
    %1443 = vadd.xlane.f32.xlu0 %v1442
    %v1444 = vpop.xlane.xlu0 %1443
    %v1445 = vsel %vm1223, %v1313, 0.0
    %1446 = vadd.xlane.f32.xlu0 %v1445
    %v1447 = vpop.xlane.xlu0 %1446
    %v1448 = vsel %vm1223, %v1314, 0.0
    %1449 = vadd.xlane.f32.xlu0 %v1448
    %v1450 = vpop.xlane.xlu0 %1449
    %v1451 = vsel %vm1223, %v1315, 0.0
    %1452 = vadd.xlane.f32.xlu0 %v1451
    %v1453 = vpop.xlane.xlu0 %1452
    %v1454 = vsel %vm1223, %v1316, 0.0
    %1455 = vadd.xlane.f32.xlu0 %v1454
    %v1456 = vpop.xlane.xlu0 %1455
    %v1457 = vsel %vm1223, %v1317, 0.0
    %1458 = vadd.xlane.f32.xlu0 %v1457
    %v1459 = vpop.xlane.xlu0 %1458
    %v1460 = vsel %vm1223, %v1318, 0.0
    %1461 = vadd.xlane.f32.xlu0 %v1460
    %v1462 = vpop.xlane.xlu0 %1461
    %v1463 = vsel %vm1223, %v1319, 0.0
    %1464 = vadd.xlane.f32.xlu0 %v1463
    %v1465 = vpop.xlane.xlu0 %1464
    %v1466 = vmul.f32 %v1444, 0.014285714
    %v1467 = vmul.f32 %v1447, 0.014285714
    %v1468 = vmul.f32 %v1450, 0.014285714
    %v1469 = vmul.f32 %v1453, 0.014285714
    %v1470 = vmul.f32 %v1456, 0.014285714
    %v1471 = vmul.f32 %v1459, 0.014285714
    %v1472 = vmul.f32 %v1462, 0.014285714
    %v1473 = vmul.f32 %v1465, 0.014285714
    %v1474 = vadd.f32 %v1434, %v1466
    %v1475 = vadd.f32 %v1435, %v1467
    %v1476 = vadd.f32 %v1436, %v1468
    %v1477 = vadd.f32 %v1437, %v1469
    %v1478 = vadd.f32 %v1438, %v1470
    %v1479 = vadd.f32 %v1439, %v1471
    %v1480 = vadd.f32 %v1440, %v1472
    %v1481 = vadd.f32 %v1441, %v1473
    %v1482 = vsub.f32 0.0, %v1474
    %v1483 = vsub.f32 0.0, %v1475
    %v1484 = vsub.f32 0.0, %v1476
    %v1485 = vsub.f32 0.0, %v1477
    %v1486 = vsub.f32 0.0, %v1478
    %v1487 = vsub.f32 0.0, %v1479
    %v1488 = vsub.f32 0.0, %v1480
    %v1489 = vsub.f32 0.0, %v1481
    %v1490 = vmul.f32 %v1394, %v1482
    %v1491 = vmul.f32 %v1395, %v1483
    %v1492 = vmul.f32 %v1396, %v1484
    %v1493 = vmul.f32 %v1397, %v1485
    %v1494 = vmul.f32 %v1398, %v1486
    %v1495 = vmul.f32 %v1399, %v1487
    %v1496 = vmul.f32 %v1400, %v1488
    %v1497 = vmul.f32 %v1401, %v1489
    %vm1498 = vcmask 7168
    %v1499 = vsel %vm1498, %v1490, 0.0
    %v1500 = vsel %vm1498, %v1491, 0.0
    %v1501 = vadd.f32 %v1499, %v1500
    %v1502 = vsel %vm1498, %v1492, 0.0
    %v1503 = vadd.f32 %v1501, %v1502
    %v1504 = vsel %vm1498, %v1493, 0.0
    %v1505 = vadd.f32 %v1503, %v1504
    %v1506 = vsel %vm1498, %v1494, 0.0
    %v1507 = vadd.f32 %v1505, %v1506
    %v1508 = vsel %vm1498, %v1495, 0.0
    %v1509 = vadd.f32 %v1507, %v1508
    %v1510 = vsel %vm1498, %v1496, 0.0
    %v1511 = vadd.f32 %v1509, %v1510
    %v1512 = vsel %vm1498, %v1497, 0.0
    %v1513 = vadd.f32 %v1511, %v1512
    %v1514 = vrot.slane %v1513, 4
    %v1515 = vadd.f32 %v1513, %v1514
    %v1516 = vrot.slane %v1515, 2
    %v1517 = vadd.f32 %v1515, %v1516
    %v1518 = vrot.slane %v1517, 1
    %v1519 = vadd.f32 %v1517, %v1518
    %vm1520 = vcmask 0
    %1521 = vst.msk [vmem:[#allocation4] sm:$0x1] %vm1520, %v1519
    %vm1522 = vcmp.ge.f32.partialorder %v1215, %v1226
    %vm1523 = vcmp.ge.f32.partialorder %v1216, %v1229
    %vm1524 = vcmp.ge.f32.partialorder %v1217, %v1232
    %vm1525 = vcmp.ge.f32.partialorder %v1218, %v1235
    %vm1526 = vcmp.ge.f32.partialorder %v1219, %v1238
    %vm1527 = vcmp.ge.f32.partialorder %v1220, %v1241
    %vm1528 = vcmp.ge.f32.partialorder %v1221, %v1244
    %vm1529 = vcmp.ge.f32.partialorder %v1222, %v1247
    %v1530 = vsel %vm1522, %v1329, 7
    %v1531 = vsel %vm1523, %v1329, 7
    %v1532 = vsel %vm1524, %v1329, 7
    %v1533 = vsel %vm1525, %v1329, 7
    %v1534 = vsel %vm1526, %v1329, 7
    %v1535 = vsel %vm1527, %v1329, 7
    %v1536 = vsel %vm1528, %v1329, 7
    %v1537 = vsel %vm1529, %v1329, 7
    %v1538 = vsel %vm1223, %v1530, 2147483647
    %v1539 = vand.u32 %v1538, 65535
    %v1540 = vshra.s32 %v1538, 16
    %v1541 = vcvt.s32.f32 %v1539
    %v1542 = vcvt.s32.f32 %v1540
    %1543 = vmin.xlane.f32.xlu0 %v1542
    %v1544 = vpop.xlane.xlu0 %1543
    %vm1545 = vcmp.eq.f32.partialorder %v1542, %v1544
    %v1546 = vsel %vm1545, %v1541, inf
    %1547 = vmin.xlane.f32.xlu0 %v1546
    %v1548 = vpop.xlane.xlu0 %1547
    %v1549 = vcvt.f32.s32 %v1548
    %v1550 = vcvt.f32.s32 %v1544
    %v1551 = vshll.u32 %v1550, 16
    %v1552 = vadd.s32 %v1551, %v1549
    %v1553 = vsel %vm1223, %v1531, 2147483647
    %v1554 = vand.u32 %v1553, 65535
    %v1555 = vshra.s32 %v1553, 16
    %v1556 = vcvt.s32.f32 %v1554
    %v1557 = vcvt.s32.f32 %v1555
    %1558 = vmin.xlane.f32.xlu0 %v1557
    %v1559 = vpop.xlane.xlu0 %1558
    %vm1560 = vcmp.eq.f32.partialorder %v1557, %v1559
    %v1561 = vsel %vm1560, %v1556, inf
    %1562 = vmin.xlane.f32.xlu0 %v1561
    %v1563 = vpop.xlane.xlu0 %1562
    %v1564 = vcvt.f32.s32 %v1563
    %v1565 = vcvt.f32.s32 %v1559
    %v1566 = vshll.u32 %v1565, 16
    %v1567 = vadd.s32 %v1566, %v1564
    %v1568 = vsel %vm1223, %v1532, 2147483647
    %v1569 = vand.u32 %v1568, 65535
    %v1570 = vshra.s32 %v1568, 16
    %v1571 = vcvt.s32.f32 %v1569
    %v1572 = vcvt.s32.f32 %v1570
    %1573 = vmin.xlane.f32.xlu0 %v1572
    %v1574 = vpop.xlane.xlu0 %1573
    %vm1575 = vcmp.eq.f32.partialorder %v1572, %v1574
    %v1576 = vsel %vm1575, %v1571, inf
    %1577 = vmin.xlane.f32.xlu0 %v1576
    %v1578 = vpop.xlane.xlu0 %1577
    %v1579 = vcvt.f32.s32 %v1578
    %v1580 = vcvt.f32.s32 %v1574
    %v1581 = vshll.u32 %v1580, 16
    %v1582 = vadd.s32 %v1581, %v1579
    %v1583 = vsel %vm1223, %v1533, 2147483647
    %v1584 = vand.u32 %v1583, 65535
    %v1585 = vshra.s32 %v1583, 16
    %v1586 = vcvt.s32.f32 %v1584
    %v1587 = vcvt.s32.f32 %v1585
    %1588 = vmin.xlane.f32.xlu0 %v1587
    %v1589 = vpop.xlane.xlu0 %1588
    %vm1590 = vcmp.eq.f32.partialorder %v1587, %v1589
    %v1591 = vsel %vm1590, %v1586, inf
    %1592 = vmin.xlane.f32.xlu0 %v1591
    %v1593 = vpop.xlane.xlu0 %1592
    %v1594 = vcvt.f32.s32 %v1593
    %v1595 = vcvt.f32.s32 %v1589
    %v1596 = vshll.u32 %v1595, 16
    %v1597 = vadd.s32 %v1596, %v1594
    %v1598 = vsel %vm1223, %v1534, 2147483647
    %v1599 = vand.u32 %v1598, 65535
    %v1600 = vshra.s32 %v1598, 16
    %v1601 = vcvt.s32.f32 %v1599
    %v1602 = vcvt.s32.f32 %v1600
    %1603 = vmin.xlane.f32.xlu0 %v1602
    %v1604 = vpop.xlane.xlu0 %1603
    %vm1605 = vcmp.eq.f32.partialorder %v1602, %v1604
    %v1606 = vsel %vm1605, %v1601, inf
    %1607 = vmin.xlane.f32.xlu0 %v1606
    %v1608 = vpop.xlane.xlu0 %1607
    %v1609 = vcvt.f32.s32 %v1608
    %v1610 = vcvt.f32.s32 %v1604
    %v1611 = vshll.u32 %v1610, 16
    %v1612 = vadd.s32 %v1611, %v1609
    %v1613 = vsel %vm1223, %v1535, 2147483647
    %v1614 = vand.u32 %v1613, 65535
    %v1615 = vshra.s32 %v1613, 16
    %v1616 = vcvt.s32.f32 %v1614
    %v1617 = vcvt.s32.f32 %v1615
    %1618 = vmin.xlane.f32.xlu0 %v1617
    %v1619 = vpop.xlane.xlu0 %1618
    %vm1620 = vcmp.eq.f32.partialorder %v1617, %v1619
    %v1621 = vsel %vm1620, %v1616, inf
    %1622 = vmin.xlane.f32.xlu0 %v1621
    %v1623 = vpop.xlane.xlu0 %1622
    %v1624 = vcvt.f32.s32 %v1623
    %v1625 = vcvt.f32.s32 %v1619
    %v1626 = vshll.u32 %v1625, 16
    %v1627 = vadd.s32 %v1626, %v1624
    %v1628 = vsel %vm1223, %v1536, 2147483647
    %v1629 = vand.u32 %v1628, 65535
    %v1630 = vshra.s32 %v1628, 16
    %v1631 = vcvt.s32.f32 %v1629
    %v1632 = vcvt.s32.f32 %v1630
    %1633 = vmin.xlane.f32.xlu0 %v1632
    %v1634 = vpop.xlane.xlu0 %1633
    %vm1635 = vcmp.eq.f32.partialorder %v1632, %v1634
    %v1636 = vsel %vm1635, %v1631, inf
    %1637 = vmin.xlane.f32.xlu0 %v1636
    %v1638 = vpop.xlane.xlu0 %1637
    %v1639 = vcvt.f32.s32 %v1638
    %v1640 = vcvt.f32.s32 %v1634
    %v1641 = vshll.u32 %v1640, 16
    %v1642 = vadd.s32 %v1641, %v1639
    %v1643 = vsel %vm1223, %v1537, 2147483647
    %v1644 = vand.u32 %v1643, 65535
    %v1645 = vshra.s32 %v1643, 16
    %v1646 = vcvt.s32.f32 %v1644
    %v1647 = vcvt.s32.f32 %v1645
    %1648 = vmin.xlane.f32.xlu0 %v1647
    %v1649 = vpop.xlane.xlu0 %1648
    %vm1650 = vcmp.eq.f32.partialorder %v1647, %v1649
    %v1651 = vsel %vm1650, %v1646, inf
    %1652 = vmin.xlane.f32.xlu0 %v1651
    %v1653 = vpop.xlane.xlu0 %1652
    %v1654 = vcvt.f32.s32 %v1653
    %v1655 = vcvt.f32.s32 %v1649
    %v1656 = vshll.u32 %v1655, 16
    %v1657 = vadd.s32 %v1656, %v1654
    %vm1658 = vcmp.eq.s32.totalorder %v1552, %v1320
    %vm1659 = vcmp.eq.s32.totalorder %v1567, %v1321
    %vm1660 = vcmp.eq.s32.totalorder %v1582, %v1322
    %vm1661 = vcmp.eq.s32.totalorder %v1597, %v1323
    %vm1662 = vcmp.eq.s32.totalorder %v1612, %v1324
    %vm1663 = vcmp.eq.s32.totalorder %v1627, %v1325
    %vm1664 = vcmp.eq.s32.totalorder %v1642, %v1326
    %vm1665 = vcmp.eq.s32.totalorder %v1657, %v1327
    %v1666 = vsel %vm1658, 1, 0
    %v1667 = vsel %vm1659, 1, 0
    %v1668 = vsel %vm1660, 1, 0
    %v1669 = vsel %vm1661, 1, 0
    %v1670 = vsel %vm1662, 1, 0
    %v1671 = vsel %vm1663, 1, 0
    %v1672 = vsel %vm1664, 1, 0
    %v1673 = vsel %vm1665, 1, 0
    %v1674 = vcvt.s32.f32 %v1666
    %v1675 = vcvt.s32.f32 %v1667
    %v1676 = vcvt.s32.f32 %v1668
    %v1677 = vcvt.s32.f32 %v1669
    %v1678 = vcvt.s32.f32 %v1670
    %v1679 = vcvt.s32.f32 %v1671
    %v1680 = vcvt.s32.f32 %v1672
    %v1681 = vcvt.s32.f32 %v1673
    %v1682 = vmul.f32 %v1394, %v1674
    %v1683 = vmul.f32 %v1395, %v1675
    %v1684 = vmul.f32 %v1396, %v1676
    %v1685 = vmul.f32 %v1397, %v1677
    %v1686 = vmul.f32 %v1398, %v1678
    %v1687 = vmul.f32 %v1399, %v1679
    %v1688 = vmul.f32 %v1400, %v1680
    %v1689 = vmul.f32 %v1401, %v1681
    %v1690 = vsel %vm1498, %v1682, 0.0
    %v1691 = vsel %vm1498, %v1683, 0.0
    %v1692 = vadd.f32 %v1690, %v1691
    %v1693 = vsel %vm1498, %v1684, 0.0
    %v1694 = vadd.f32 %v1692, %v1693
    %v1695 = vsel %vm1498, %v1685, 0.0
    %v1696 = vadd.f32 %v1694, %v1695
    %v1697 = vsel %vm1498, %v1686, 0.0
    %v1698 = vadd.f32 %v1696, %v1697
    %v1699 = vsel %vm1498, %v1687, 0.0
    %v1700 = vadd.f32 %v1698, %v1699
    %v1701 = vsel %vm1498, %v1688, 0.0
    %v1702 = vadd.f32 %v1700, %v1701
    %v1703 = vsel %vm1498, %v1689, 0.0
    %v1704 = vadd.f32 %v1702, %v1703
    %v1705 = vrot.slane %v1704, 4
    %v1706 = vadd.f32 %v1704, %v1705
    %v1707 = vrot.slane %v1706, 2
    %v1708 = vadd.f32 %v1706, %v1707
    %v1709 = vrot.slane %v1708, 1
    %v1710 = vadd.f32 %v1708, %v1709
    %1711 = vst.msk [vmem:[#allocation6] sm:$0x1] %vm1520, %v1710
    %1712 = vst.msk [vmem:[%s7] sm:$0xff] %vm1498, %v1552
    %1713 = vst.msk [vmem:[%s7 + $0x8] sm:$0xff] %vm1498, %v1567
    %1714 = vst.msk [vmem:[%s7 + $0x10] sm:$0xff] %vm1498, %v1582
    %1715 = vst.msk [vmem:[%s7 + $0x18] sm:$0xff] %vm1498, %v1597
    %1716 = vst.msk [vmem:[%s7 + $0x20] sm:$0xff] %vm1498, %v1612
    %1717 = vst.msk [vmem:[%s7 + $0x28] sm:$0xff] %vm1498, %v1627
    %1718 = vst.msk [vmem:[%s7 + $0x30] sm:$0xff] %vm1498, %v1642
    %1719 = vst.msk [vmem:[%s7 + $0x38] sm:$0xff] %vm1498, %v1657
    // Predicated region
    $region30: #{only_gru_forward.1} parent=1 // pred_check
      _
    $region31: #{only_gru_forward.1} parent=1 // pred_check_branch
      %1721 = sbr.rel (0) target = $region33
    $region32: #{only_gru_forward.1} parent=1 // pred_region
      _
    $region33: #{only_gru_forward.1} parent=1 // pred_fallthru
      _
    // Predicated region
    $region34: #{only_gru_forward.1} parent=1 // pred_check
      _
    $region35: #{only_gru_forward.1} parent=1 // pred_check_branch
      %1723 = sbr.rel (0) target = $region37
    $region36: #{only_gru_forward.1} parent=1 // pred_region
      %s1725 = ssub.s32 16, 16
      %1726 = vsyncadd [#allocation5], %s1725
      %s1728 = sshll.u32 [#allocation4], 4
      %s1729 = int_to_ptr.vmem [resolvable:$true] %s1728
      %1731 = dma.vmem_to_hbm [thread:$0]  %s1729, 16, %s8, [#allocation5]
    $region37: #{only_gru_forward.1} parent=1 // pred_fallthru
      _
    // Predicated region
    $region38: #{only_gru_forward.1} parent=1 // pred_check
      _
    $region39: #{only_gru_forward.1} parent=1 // pred_check_branch
      %1733 = sbr.rel (0) target = $region41
    $region40: #{only_gru_forward.1} parent=1 // pred_region
      %s1735 = ssub.s32 16, 16
      %1736 = vsyncadd [#allocation7], %s1735
      %s1738 = sshll.u32 [#allocation6], 4
      %s1739 = int_to_ptr.vmem [resolvable:$true] %s1738
      %1741 = dma.vmem_to_hbm [thread:$0]  %s1739, 16, %s9, [#allocation7]
    $region41: #{only_gru_forward.1} parent=1 // pred_fallthru
      _
    // Predicated region
    $region42: #{only_gru_forward.1} parent=1 // pred_check
      _
    $region43: #{only_gru_forward.1} parent=1 // pred_check_branch
      %1743 = sbr.rel (0) target = $region45
    $region44: #{only_gru_forward.1} parent=1 // pred_region
      _
    $region45: #{only_gru_forward.1} parent=1 // pred_fallthru
      _
    // Predicated region
    $region46: #{only_gru_forward.1} parent=1 // pred_check
      _
    $region47: #{only_gru_forward.1} parent=1 // pred_check_branch
      %1745 = sbr.rel (0) target = $region49
    $region48: #{only_gru_forward.1} parent=1 // pred_region
      %1746 = dma.done [#allocation5], 16
    $region49: #{only_gru_forward.1} parent=1 // pred_fallthru
      _
    // Predicated region
    $region50: #{only_gru_forward.1} parent=1 // pred_check
      _
    $region51: #{only_gru_forward.1} parent=1 // pred_check_branch
      %1748 = sbr.rel (0) target = $region53
    $region52: #{only_gru_forward.1} parent=1 // pred_region
      %1749 = dma.done [#allocation7], 16
    $region53: #{only_gru_forward.1} parent=1 // pred_fallthru
      _
    %1750 = vsyncpa [#allocation5], 1
    %1751 = vsyncpa [#allocation7], 1

</llo_original>
